<compile_context>
chip_gen: v6e
topology: v6e:2x2x1
jax: 0.10.0
libtpu: 0.0.40
codegen_flags: <defaults>
</compile_context>

<pallas_src>
import math

import jax
import jax.numpy as jnp
from jax.experimental import pallas as pl
from jax.experimental.pallas import tpu as pltpu

# ---------------- config (mirrors model_config.BB.params) ----------------
NUM_TIMESTEPS = 1000
MAX_VAR = 1.0          # max_var
LOSS_TYPE = "l1"
OBJECTIVE = "noise"
TEMB_DIM = 32          # timestep-embedding width of the stand-in denoiser
HIDDEN = 128           # hidden width of the stand-in denoiser (K=128 lane aligned)


def make_schedule(T=NUM_TIMESTEPS, max_var=MAX_VAR):
    # register_schedule(), mt_type == 'linear'
    m_t = jnp.linspace(0.001, 0.999, T, dtype=jnp.float32)
    variance_t = 2.0 * (m_t - m_t ** 2) * max_var
    return m_t, variance_t


# ---------------------------- fused Pallas kernel -----------------------------

def bridge_fused_kernel(m_ref, sig_ref, inv_ref,
                        x0_ref, y_ref, noise_ref, tbias_ref,
                        w1x_ref, w1y_ref, w2_ref, b2_ref,
                        x0rec_ref, lsum_ref):
    """Fused q_sample + per-pixel MLP denoiser + L1 partial sums + x0_recon.

    All image tensors are (C, B*HW) with pixels on the 128-lane axis; the two
    matmuls are W^T(rows,K) @ slab(K, B*HW) so outputs stay lane-dense.
    """
    m = m_ref[...]            # (1, B*HW)  per-column m_t
    sig = sig_ref[...]        # (1, B*HW)  per-column sigma_t
    x0 = x0_ref[...]          # (C, B*HW)
    y = y_ref[...]            # (C, B*HW)
    noise = noise_ref[...]    # (C, B*HW)

    # q_sample: x_t = (1 - m_t) * x0 + m_t * y + sigma_t * noise
    x_t = (1.0 - m) * x0 + m * y + sig * noise

    # Stand-in denoiser (all f32, incl. MXU accumulation — right choice on v5e too):
    #   h = silu(W1x @ x_t + W1y @ y + tbias);  rec = W2 @ h + b2
    # W1 is split once at init so the torch-style concat([x_t, y]) never materializes.
    h = jnp.dot(w1x_ref[...], x_t, preferred_element_type=jnp.float32)   # (HIDDEN, B*HW)
    h = h + jnp.dot(w1y_ref[...], y, preferred_element_type=jnp.float32)
    h = h + tbias_ref[...]                   # per-batch timestep bias, hoisted to wrapper
    h = h * jax.nn.sigmoid(h)                # SiLU
    rec = jnp.dot(w2_ref[...], h, preferred_element_type=jnp.float32) + b2_ref[...]

    # L1 loss (objective == 'noise'): lane-dense per-column partial sums
    # (sublane-only reduction); the final scalar reduce + mean happens outside.
    lsum_ref[...] = jnp.sum(jnp.abs(noise - rec), axis=0, keepdims=True)

    # predict_x0_from_objective: (x_t - m*y - sigma*rec) / (1 - m), with the
    # divide replaced by a precomputed reciprocal (inv_ref = 1/(1 - m_t)).
    x0rec_ref[...] = (x_t - m * y - sig * rec) * inv_ref[...]


def _full(shape):
    nd = len(shape)
    return pl.BlockSpec(shape, lambda i, _nd=nd: (0,) * _nd)


def bridge_forward_fused(m_row, sig_row, inv_row, x0_s, y_s, noise_s, tbias,
                         w1x, w1y, w2, b2):
    C, BHW = x0_s.shape
    # Single grid step: batch folded into the lane (N) dimension of the slabs.
    # NOTE(synk): at real UNet sizes, tile the column axis (multiples of 128)
    # and mark it "parallel" for v7x megacore / VMEM limits.
    return pl.pallas_call(
        bridge_fused_kernel,
        out_shape=(jax.ShapeDtypeStruct((C, BHW), jnp.float32),
                   jax.ShapeDtypeStruct((1, BHW), jnp.float32)),
        grid=(1,),
        in_specs=[_full(m_row.shape), _full(sig_row.shape), _full(inv_row.shape),
                  _full(x0_s.shape), _full(y_s.shape), _full(noise_s.shape),
                  _full(tbias.shape),
                  _full(w1x.shape), _full(w1y.shape), _full(w2.shape),
                  _full(b2.shape)],
        out_specs=(_full((C, BHW)), _full((1, BHW))),
        compiler_params=pltpu.CompilerParams(
            dimension_semantics=("arbitrary",)),
    )(m_row, sig_row, inv_row, x0_s, y_s, noise_s, tbias, w1x, w1y, w2, b2)


# ----------------------------- model glue ----------------------------------

def timestep_embedding(t, dim):
    half = dim // 2
    freqs = jnp.exp(-math.log(10000.0)
                    * jnp.arange(half, dtype=jnp.float32) / half)
    args = t.astype(jnp.float32)[:, None] * freqs[None, :]
    return jnp.concatenate([jnp.cos(args), jnp.sin(args)], axis=-1)


def init_denoiser_params(key, C):
    """Weights stored pre-transposed for the lane-dense (rows, K) @ (K, B*HW) matmuls."""
    Cin = 2 * C
    k1, k2, k3, k4 = jax.random.split(key, 4)
    w1x = jax.random.normal(k1, (HIDDEN, C), jnp.float32) / math.sqrt(Cin)
    w1y = jax.random.normal(k2, (HIDDEN, C), jnp.float32) / math.sqrt(Cin)
    wt = jax.random.normal(k3, (TEMB_DIM, HIDDEN), jnp.float32) / math.sqrt(TEMB_DIM)
    b1 = jnp.zeros((1, HIDDEN), jnp.float32)
    w2 = jax.random.normal(k4, (C, HIDDEN), jnp.float32) / math.sqrt(HIDDEN)
    b2 = jnp.zeros((C, 1), jnp.float32)
    return (w1x, w1y, wt, b1, w2, b2)


def forward(x, y, params, key):
    """BidirectionalBridgeModel.forward: returns (recloss, {'loss','x0_recon'})."""
    B, C, H, W = x.shape
    HW = H * W
    BHW = B * HW
    m_t, variance_t = make_schedule()

    k_t, k_noise = jax.random.split(key)
    t = jax.random.randint(k_t, (B,), 0, NUM_TIMESTEPS)           # random timestep
    noise = jax.random.normal(k_noise, x.shape, dtype=jnp.float32)

    # NCHW -> lane-dense slab (C, B*HW), columns ordered batch-major.
    to_slab = lambda a: jnp.transpose(a.reshape(B, C, HW), (1, 0, 2)).reshape(C, BHW)
    x0_s, y_s, noise_s = to_slab(x), to_slab(y), to_slab(noise)

    m_sel = m_t[t]                         # extract(m_t, t, ...)
    sig_sel = jnp.sqrt(variance_t[t])      # sqrt(extract(variance_t, t, ...))
    inv1m = 1.0 / (1.0 - m_sel)            # reciprocal precomputed once per batch

    expand = lambda v: jnp.repeat(v.astype(jnp.float32), HW)[None, :]   # (1, B*HW)
    m_row, sig_row, inv_row = expand(m_sel), expand(sig_sel), expand(inv1m)

    # Timestep conditioning hoisted out of the per-pixel kernel:
    # tbias[:, b*HW:(b+1)*HW] = Wt^T @ temb_b + b1
    w1x, w1y, wt, b1, w2, b2 = params
    temb = timestep_embedding(t, TEMB_DIM)              # (B, TEMB)
    tproj = temb @ wt + b1                              # (B, HIDDEN)
    tbias = jnp.repeat(tproj, HW, axis=0).T             # (HIDDEN, B*HW)

    # Fused q_sample + denoiser + loss + x0_recon (context = y, objective = noise).
    x0rec_s, lsum = bridge_forward_fused(m_row, sig_row, inv_row,
                                         x0_s, y_s, noise_s, tbias,
                                         w1x, w1y, w2, b2)

    recloss = jnp.sum(lsum) / (B * C * HW)              # (objective - recon).abs().mean()
    x0_recon = jnp.transpose(x0rec_s.reshape(C, B, HW), (1, 0, 2)).reshape(B, C, H, W)
    return recloss, {"loss": recloss, "x0_recon": x0_recon}


if __name__ == "__main__":
    B, C, H, W = 2, 4, 16, 16
    key = jax.random.PRNGKey(0)
    kx, ky, kp, kf = jax.random.split(key, 4)

    x = jax.random.normal(kx, (B, C, H, W), jnp.float32)
    y = jax.random.normal(ky, (B, C, H, W), jnp.float32)
    params = init_denoiser_params(kp, C)

    fwd = jax.jit(forward)
    recloss, log_dict = fwd(x, y, params, kf)
    jax.block_until_ready(recloss)
    jax.block_until_ready(log_dict["x0_recon"])
    assert log_dict["x0_recon"].shape == (B, C, H, W)
    assert jnp.isfinite(recloss)
    print("KERNEL_OK")
</pallas_src>

<mosaic_0001>
module attributes {stable_mosaic.version = 11 : i64} {
  func.func @bridge_fused_kernel(%arg0: i32, %arg1: memref<1x512xf32, #tpu.memory_space<vmem>>, %arg2: memref<1x512xf32, #tpu.memory_space<vmem>>, %arg3: memref<1x512xf32, #tpu.memory_space<vmem>>, %arg4: memref<4x512xf32, #tpu.memory_space<vmem>>, %arg5: memref<4x512xf32, #tpu.memory_space<vmem>>, %arg6: memref<4x512xf32, #tpu.memory_space<vmem>>, %arg7: memref<128x512xf32, #tpu.memory_space<vmem>>, %arg8: memref<128x4xf32, #tpu.memory_space<vmem>>, %arg9: memref<128x4xf32, #tpu.memory_space<vmem>>, %arg10: memref<4x128xf32, #tpu.memory_space<vmem>>, %arg11: memref<4x1xf32, #tpu.memory_space<vmem>>, %arg12: memref<4x512xf32, #tpu.memory_space<vmem>>, %arg13: memref<1x512xf32, #tpu.memory_space<vmem>>) attributes {dimension_semantics = [#tpu.dimension_semantics<arbitrary>], iteration_bounds = array<i64: 1>, scalar_prefetch = 0 : i64, scratch_operands = 0 : i64, tpu.core_type = #tpu.core_type<tc>, window_params = [{pipeline_mode = #tpu.pipeline_mode<synchronous>, transform_indices = @transform_0, window_bounds = array<i64: 1, 512>}, {pipeline_mode = #tpu.pipeline_mode<synchronous>, transform_indices = @transform_1, window_bounds = array<i64: 1, 512>}, {pipeline_mode = #tpu.pipeline_mode<synchronous>, transform_indices = @transform_2, window_bounds = array<i64: 1, 512>}, {pipeline_mode = #tpu.pipeline_mode<synchronous>, transform_indices = @transform_3, window_bounds = array<i64: 4, 512>}, {pipeline_mode = #tpu.pipeline_mode<synchronous>, transform_indices = @transform_4, window_bounds = array<i64: 4, 512>}, {pipeline_mode = #tpu.pipeline_mode<synchronous>, transform_indices = @transform_5, window_bounds = array<i64: 4, 512>}, {pipeline_mode = #tpu.pipeline_mode<synchronous>, transform_indices = @transform_6, window_bounds = array<i64: 128, 512>}, {pipeline_mode = #tpu.pipeline_mode<synchronous>, transform_indices = @transform_7, window_bounds = array<i64: 128, 4>}, {pipeline_mode = #tpu.pipeline_mode<synchronous>, transform_indices = @transform_8, window_bounds = array<i64: 128, 4>}, {pipeline_mode = #tpu.pipeline_mode<synchronous>, transform_indices = @transform_9, window_bounds = array<i64: 4, 128>}, {pipeline_mode = #tpu.pipeline_mode<synchronous>, transform_indices = @transform_10, window_bounds = array<i64: 4, 1>}, {pipeline_mode = #tpu.pipeline_mode<synchronous>, transform_indices = @transform_11, window_bounds = array<i64: 4, 512>}, {pipeline_mode = #tpu.pipeline_mode<synchronous>, transform_indices = @transform_12, window_bounds = array<i64: 1, 512>}]} {
    %c0 = arith.constant 0 : index
    %c0_0 = arith.constant 0 : index
    %0 = vector.load %arg1[%c0, %c0_0] : memref<1x512xf32, #tpu.memory_space<vmem>>, vector<1x512xf32>
    %c0_1 = arith.constant 0 : index
    %c0_2 = arith.constant 0 : index
    %1 = vector.load %arg2[%c0_1, %c0_2] : memref<1x512xf32, #tpu.memory_space<vmem>>, vector<1x512xf32>
    %c0_3 = arith.constant 0 : index
    %c0_4 = arith.constant 0 : index
    %2 = vector.load %arg4[%c0_3, %c0_4] : memref<4x512xf32, #tpu.memory_space<vmem>>, vector<4x512xf32>
    %c0_5 = arith.constant 0 : index
    %c0_6 = arith.constant 0 : index
    %3 = vector.load %arg5[%c0_5, %c0_6] : memref<4x512xf32, #tpu.memory_space<vmem>>, vector<4x512xf32>
    %c0_7 = arith.constant 0 : index
    %c0_8 = arith.constant 0 : index
    %4 = vector.load %arg6[%c0_7, %c0_8] : memref<4x512xf32, #tpu.memory_space<vmem>>, vector<4x512xf32>
    %cst = arith.constant 1.000000e+00 : f32
    %5 = vector.broadcast %cst : f32 to vector<1x512xf32>
    %6 = arith.subf %5, %0 : vector<1x512xf32>
    %7 = vector.broadcast %6 : vector<1x512xf32> to vector<4x512xf32>
    %8 = arith.mulf %7, %2 : vector<4x512xf32>
    %9 = vector.broadcast %0 : vector<1x512xf32> to vector<4x512xf32>
    %10 = arith.mulf %9, %3 : vector<4x512xf32>
    %11 = arith.addf %8, %10 : vector<4x512xf32>
    %12 = vector.broadcast %1 : vector<1x512xf32> to vector<4x512xf32>
    %13 = arith.mulf %12, %4 : vector<4x512xf32>
    %14 = arith.addf %11, %13 : vector<4x512xf32>
    %c0_9 = arith.constant 0 : index
    %c0_10 = arith.constant 0 : index
    %15 = vector.load %arg8[%c0_9, %c0_10] : memref<128x4xf32, #tpu.memory_space<vmem>>, vector<128x4xf32>
    %cst_11 = arith.constant dense<0.000000e+00> : vector<128x512xf32>
    %16 = tpu.matmul %15, %14, %cst_11 {dimension_numbers = #tpu.dot_dimension_numbers<[1], [0], [0], [1], [0, 0, 1, 1], [], []>} : vector<128x4xf32>, vector<4x512xf32>, vector<128x512xf32> -> vector<128x512xf32>
    %c0_12 = arith.constant 0 : index
    %c0_13 = arith.constant 0 : index
    %17 = vector.load %arg9[%c0_12, %c0_13] : memref<128x4xf32, #tpu.memory_space<vmem>>, vector<128x4xf32>
    %cst_14 = arith.constant dense<0.000000e+00> : vector<128x512xf32>
    %18 = tpu.matmul %17, %3, %cst_14 {dimension_numbers = #tpu.dot_dimension_numbers<[1], [0], [0], [1], [0, 0, 1, 1], [], []>} : vector<128x4xf32>, vector<4x512xf32>, vector<128x512xf32> -> vector<128x512xf32>
    %19 = arith.addf %16, %18 : vector<128x512xf32>
    %c0_15 = arith.constant 0 : index
    %c0_16 = arith.constant 0 : index
    %20 = vector.load %arg7[%c0_15, %c0_16] : memref<128x512xf32, #tpu.memory_space<vmem>>, vector<128x512xf32>
    %21 = arith.addf %19, %20 : vector<128x512xf32>
    %22 = arith.negf %21 : vector<128x512xf32>
    %23 = math.exp %22 : vector<128x512xf32>
    %cst_17 = arith.constant 1.000000e+00 : f32
    %24 = vector.broadcast %cst_17 : f32 to vector<128x512xf32>
    %25 = arith.addf %24, %23 : vector<128x512xf32>
    %26 = arith.divf %24, %25 : vector<128x512xf32>
    %27 = arith.mulf %21, %26 : vector<128x512xf32>
    %c0_18 = arith.constant 0 : index
    %c0_19 = arith.constant 0 : index
    %28 = vector.load %arg10[%c0_18, %c0_19] : memref<4x128xf32, #tpu.memory_space<vmem>>, vector<4x128xf32>
    %cst_20 = arith.constant dense<0.000000e+00> : vector<4x512xf32>
    %29 = tpu.matmul %28, %27, %cst_20 {dimension_numbers = #tpu.dot_dimension_numbers<[1], [0], [0], [1], [0, 0, 1, 1], [], []>} : vector<4x128xf32>, vector<128x512xf32>, vector<4x512xf32> -> vector<4x512xf32>
    %c0_21 = arith.constant 0 : index
    %c0_22 = arith.constant 0 : index
    %30 = vector.load %arg11[%c0_21, %c0_22] : memref<4x1xf32, #tpu.memory_space<vmem>>, vector<4x1xf32>
    %31 = vector.broadcast %30 : vector<4x1xf32> to vector<4x512xf32>
    %32 = arith.addf %29, %31 : vector<4x512xf32>
    %33 = arith.subf %4, %32 : vector<4x512xf32>
    %34 = math.absf %33 : vector<4x512xf32>
    %cst_23 = arith.constant dense<0.000000e+00> : vector<512xf32>
    %35 = vector.multi_reduction <add>, %34, %cst_23 [0] : vector<4x512xf32> to vector<512xf32>
    %36 = vector.shape_cast %35 : vector<512xf32> to vector<1x512xf32>
    %c0_24 = arith.constant 0 : index
    %c0_25 = arith.constant 0 : index
    %37 = vector.load %arg13[%c0_24, %c0_25] : memref<1x512xf32, #tpu.memory_space<vmem>>, vector<1x512xf32>
    tpu.vector_store %arg13[%c0_24, %c0_25], %36 {strides = array<i32>} : memref<1x512xf32, #tpu.memory_space<vmem>>, vector<1x512xf32>,
    %38 = vector.broadcast %0 : vector<1x512xf32> to vector<4x512xf32>
    %39 = arith.mulf %38, %3 : vector<4x512xf32>
    %40 = arith.subf %14, %39 : vector<4x512xf32>
    %41 = vector.broadcast %1 : vector<1x512xf32> to vector<4x512xf32>
    %42 = arith.mulf %41, %32 : vector<4x512xf32>
    %43 = arith.subf %40, %42 : vector<4x512xf32>
    %c0_26 = arith.constant 0 : index
    %c0_27 = arith.constant 0 : index
    %44 = vector.load %arg3[%c0_26, %c0_27] : memref<1x512xf32, #tpu.memory_space<vmem>>, vector<1x512xf32>
    %45 = vector.broadcast %44 : vector<1x512xf32> to vector<4x512xf32>
    %46 = arith.mulf %43, %45 : vector<4x512xf32>
    %c0_28 = arith.constant 0 : index
    %c0_29 = arith.constant 0 : index
    %47 = vector.load %arg12[%c0_28, %c0_29] : memref<4x512xf32, #tpu.memory_space<vmem>>, vector<4x512xf32>
    tpu.vector_store %arg12[%c0_28, %c0_29], %46 {strides = array<i32>} : memref<4x512xf32, #tpu.memory_space<vmem>>, vector<4x512xf32>,
    return
  }
  func.func @transform_0(%arg0: i32) -> (i32, i32) {
    %c0_i32 = arith.constant 0 : i32
    %c0_i32_0 = arith.constant 0 : i32
    %c0_i32_1 = arith.constant 0 : i32
    return %c0_i32, %c0_i32_0 : i32, i32
  }
  func.func @transform_1(%arg0: i32) -> (i32, i32) {
    %c0_i32 = arith.constant 0 : i32
    %c0_i32_0 = arith.constant 0 : i32
    %c0_i32_1 = arith.constant 0 : i32
    return %c0_i32, %c0_i32_0 : i32, i32
  }
  func.func @transform_2(%arg0: i32) -> (i32, i32) {
    %c0_i32 = arith.constant 0 : i32
    %c0_i32_0 = arith.constant 0 : i32
    %c0_i32_1 = arith.constant 0 : i32
    return %c0_i32, %c0_i32_0 : i32, i32
  }
  func.func @transform_3(%arg0: i32) -> (i32, i32) {
    %c0_i32 = arith.constant 0 : i32
    %c0_i32_0 = arith.constant 0 : i32
    %c0_i32_1 = arith.constant 0 : i32
    return %c0_i32, %c0_i32_0 : i32, i32
  }
  func.func @transform_4(%arg0: i32) -> (i32, i32) {
    %c0_i32 = arith.constant 0 : i32
    %c0_i32_0 = arith.constant 0 : i32
    %c0_i32_1 = arith.constant 0 : i32
    return %c0_i32, %c0_i32_0 : i32, i32
  }
  func.func @transform_5(%arg0: i32) -> (i32, i32) {
    %c0_i32 = arith.constant 0 : i32
    %c0_i32_0 = arith.constant 0 : i32
    %c0_i32_1 = arith.constant 0 : i32
    return %c0_i32, %c0_i32_0 : i32, i32
  }
  func.func @transform_6(%arg0: i32) -> (i32, i32) {
    %c0_i32 = arith.constant 0 : i32
    %c0_i32_0 = arith.constant 0 : i32
    %c0_i32_1 = arith.constant 0 : i32
    return %c0_i32, %c0_i32_0 : i32, i32
  }
  func.func @transform_7(%arg0: i32) -> (i32, i32) {
    %c0_i32 = arith.constant 0 : i32
    %c0_i32_0 = arith.constant 0 : i32
    %c0_i32_1 = arith.constant 0 : i32
    return %c0_i32, %c0_i32_0 : i32, i32
  }
  func.func @transform_8(%arg0: i32) -> (i32, i32) {
    %c0_i32 = arith.constant 0 : i32
    %c0_i32_0 = arith.constant 0 : i32
    %c0_i32_1 = arith.constant 0 : i32
    return %c0_i32, %c0_i32_0 : i32, i32
  }
  func.func @transform_9(%arg0: i32) -> (i32, i32) {
    %c0_i32 = arith.constant 0 : i32
    %c0_i32_0 = arith.constant 0 : i32
    %c0_i32_1 = arith.constant 0 : i32
    return %c0_i32, %c0_i32_0 : i32, i32
  }
  func.func @transform_10(%arg0: i32) -> (i32, i32) {
    %c0_i32 = arith.constant 0 : i32
    %c0_i32_0 = arith.constant 0 : i32
    %c0_i32_1 = arith.constant 0 : i32
    return %c0_i32, %c0_i32_0 : i32, i32
  }
  func.func @transform_11(%arg0: i32) -> (i32, i32) {
    %c0_i32 = arith.constant 0 : i32
    %c0_i32_0 = arith.constant 0 : i32
    %c0_i32_1 = arith.constant 0 : i32
    return %c0_i32, %c0_i32_0 : i32, i32
  }
  func.func @transform_12(%arg0: i32) -> (i32, i32) {
    %c0_i32 = arith.constant 0 : i32
    %c0_i32_0 = arith.constant 0 : i32
    %c0_i32_1 = arith.constant 0 : i32
    return %c0_i32, %c0_i32_0 : i32, i32
  }
}

</mosaic_0001>

<llo_original>
// kernel: forward.21
$region0: #{forward.21}
  #allocation0 [shape = 'u32[]', space=smem, size = 0x4, offset = 0x4, fixed_abs, tag = 'smem constant byte address 0x4 - core index']
  #allocation1 [shape = 'u32[144,128]{1,0:T(1,128)}', space=vmem, size = 0x12000, scoped, tag = 'internal scratch']
  %s0 = inlined_call_operand.vmem [shape: f32[1,512], index: 0, kind: input, shape index: {}]
  %s1 = inlined_call_operand.vmem [shape: f32[1,512], index: 1, kind: input, shape index: {}]
  %s2 = inlined_call_operand.vmem [shape: f32[1,512], index: 2, kind: input, shape index: {}]
  %s3 = inlined_call_operand.vmem [shape: f32[4,512], index: 3, kind: input, shape index: {}]
  %s4 = inlined_call_operand.vmem [shape: f32[4,512], index: 4, kind: input, shape index: {}]
  %s5 = inlined_call_operand.vmem [shape: f32[4,512], index: 5, kind: input, shape index: {}]
  %s6 = inlined_call_operand.vmem [shape: f32[128,512], index: 6, kind: input, shape index: {}]
  %s7 = inlined_call_operand.vmem [shape: f32[128,4], index: 7, kind: input, shape index: {}]
  %s8 = inlined_call_operand.vmem [shape: f32[128,4], index: 8, kind: input, shape index: {}]
  %s9 = inlined_call_operand.vmem [shape: f32[4,128], index: 9, kind: input, shape index: {}]
  %s10 = inlined_call_operand.vmem [shape: f32[4,1], index: 10, kind: input, shape index: {}]
  %s11 = inlined_call_operand.vmem [shape: f32[4,512], index: 11, kind: output, shape index: {0}]
  %s12 = inlined_call_operand.vmem [shape: f32[1,512], index: 12, kind: output, shape index: {1}]
  %13 = xla_tuple %s11, %s12
  %s14 = sld [smem:[#allocation0]]
  $region62: #{forward.21} parent=0
    _
  %s16 = ssub.s32 1, %s14
  %s17 = scalar_select 0, %s16, %s14
  // Predicated region
  $region2: #{forward.21} parent=0 // pred_check
    _
  $region3: #{forward.21} parent=0 // pred_check_branch
    %19 = sbr.rel (0) target = $region5
  $region4: #{forward.21} parent=0 // pred_region
    _
  $region5: #{forward.21} parent=0 // pred_fallthru
    _
  // Predicated region
  $region6: #{forward.21} parent=0 // pred_check
    _
  $region7: #{forward.21} parent=0 // pred_check_branch
    %21 = sbr.rel (0) target = $region9
  $region8: #{forward.21} parent=0 // pred_region
    _
  $region9: #{forward.21} parent=0 // pred_fallthru
    _
  // Predicated region
  $region10: #{forward.21} parent=0 // pred_check
    _
  $region11: #{forward.21} parent=0 // pred_check_branch
    %23 = sbr.rel (0) target = $region13
  $region12: #{forward.21} parent=0 // pred_region
    _
  $region13: #{forward.21} parent=0 // pred_fallthru
    _
  // Predicated region
  $region14: #{forward.21} parent=0 // pred_check
    _
  $region15: #{forward.21} parent=0 // pred_check_branch
    %25 = sbr.rel (0) target = $region17
  $region16: #{forward.21} parent=0 // pred_region
    _
  $region17: #{forward.21} parent=0 // pred_fallthru
    _
  // Predicated region
  $region18: #{forward.21} parent=0 // pred_check
    _
  $region19: #{forward.21} parent=0 // pred_check_branch
    %27 = sbr.rel (0) target = $region21
  $region20: #{forward.21} parent=0 // pred_region
    _
  $region21: #{forward.21} parent=0 // pred_fallthru
    _
  // Predicated region
  $region22: #{forward.21} parent=0 // pred_check
    _
  $region23: #{forward.21} parent=0 // pred_check_branch
    %29 = sbr.rel (0) target = $region25
  $region24: #{forward.21} parent=0 // pred_region
    _
  $region25: #{forward.21} parent=0 // pred_fallthru
    _
  // Predicated region
  $region26: #{forward.21} parent=0 // pred_check
    _
  $region27: #{forward.21} parent=0 // pred_check_branch
    %31 = sbr.rel (0) target = $region29
  $region28: #{forward.21} parent=0 // pred_region
    _
  $region29: #{forward.21} parent=0 // pred_fallthru
    _
  // Predicated region
  $region30: #{forward.21} parent=0 // pred_check
    _
  $region31: #{forward.21} parent=0 // pred_check_branch
    %33 = sbr.rel (0) target = $region33
  $region32: #{forward.21} parent=0 // pred_region
    _
  $region33: #{forward.21} parent=0 // pred_fallthru
    _
  // Predicated region
  $region34: #{forward.21} parent=0 // pred_check
    _
  $region35: #{forward.21} parent=0 // pred_check_branch
    %35 = sbr.rel (0) target = $region37
  $region36: #{forward.21} parent=0 // pred_region
    _
  $region37: #{forward.21} parent=0 // pred_fallthru
    _
  // Predicated region
  $region38: #{forward.21} parent=0 // pred_check
    _
  $region39: #{forward.21} parent=0 // pred_check_branch
    %37 = sbr.rel (0) target = $region41
  $region40: #{forward.21} parent=0 // pred_region
    _
  $region41: #{forward.21} parent=0 // pred_fallthru
    _
  // Predicated region
  $region42: #{forward.21} parent=0 // pred_check
    _
  $region43: #{forward.21} parent=0 // pred_check_branch
    %39 = sbr.rel (0) target = $region45
  $region44: #{forward.21} parent=0 // pred_region
    _
  $region45: #{forward.21} parent=0 // pred_fallthru
    _
  %v40 = vld [vmem:[%s0] sm:$0xf]
  %v41 = vld [vmem:[%s1] sm:$0xf]
  %v42 = vld [vmem:[%s3] sm:$0xff]
  %v43 = vld [vmem:[%s3 + $0x8] sm:$0xff]
  %v44 = vld [vmem:[%s4] sm:$0xff]
  %v45 = vld [vmem:[%s4 + $0x8] sm:$0xff]
  %v46 = vld [vmem:[%s5] sm:$0xff]
  %v47 = vld [vmem:[%s5 + $0x8] sm:$0xff]
  %v48 = vsub.f32 1.0, %v40
  %v50 = vlaneseq
  %v51 = vshrl.u32 %v50, 7
  %v52 = vsub.s32 0, %v51
  %v53 = vrot.slane %v48, %v52
  %v54 = vlaneseq
  %v55 = vshrl.u32 %v54, 7
  %v56 = vsub.s32 1, %v55
  %v57 = vrot.slane %v48, %v56
  %v58 = vlaneseq
  %v59 = vshrl.u32 %v58, 7
  %v60 = vsub.s32 2, %v59
  %v61 = vrot.slane %v48, %v60
  %v62 = vlaneseq
  %v63 = vshrl.u32 %v62, 7
  %v64 = vsub.s32 3, %v63
  %v65 = vrot.slane %v48, %v64
  %v72 = vcombine.high %v42, %v42
  %v73 = vcombine.high %v43, %v43
  %v76 = vmul.f32 %v53, %v42
  %v77 = vmul.f32 %v57, %v72
  %v78 = vmul.f32 %v61, %v43
  %v79 = vmul.f32 %v65, %v73
  %v81 = vlaneseq
  %v82 = vshrl.u32 %v81, 7
  %v83 = vsub.s32 0, %v82
  %v84 = vrot.slane %v40, %v83
  %v85 = vlaneseq
  %v86 = vshrl.u32 %v85, 7
  %v87 = vsub.s32 1, %v86
  %v88 = vrot.slane %v40, %v87
  %v89 = vlaneseq
  %v90 = vshrl.u32 %v89, 7
  %v91 = vsub.s32 2, %v90
  %v92 = vrot.slane %v40, %v91
  %v93 = vlaneseq
  %v94 = vshrl.u32 %v93, 7
  %v95 = vsub.s32 3, %v94
  %v96 = vrot.slane %v40, %v95
  %v103 = vcombine.high %v44, %v44
  %v104 = vcombine.high %v45, %v45
  %v107 = vmul.f32 %v84, %v44
  %v108 = vmul.f32 %v88, %v103
  %v109 = vmul.f32 %v92, %v45
  %v110 = vmul.f32 %v96, %v104
  %v111 = vadd.f32 %v76, %v107
  %v112 = vadd.f32 %v77, %v108
  %v113 = vadd.f32 %v78, %v109
  %v114 = vadd.f32 %v79, %v110
  %v116 = vlaneseq
  %v117 = vshrl.u32 %v116, 7
  %v118 = vsub.s32 0, %v117
  %v119 = vrot.slane %v41, %v118
  %v120 = vlaneseq
  %v121 = vshrl.u32 %v120, 7
  %v122 = vsub.s32 1, %v121
  %v123 = vrot.slane %v41, %v122
  %v124 = vlaneseq
  %v125 = vshrl.u32 %v124, 7
  %v126 = vsub.s32 2, %v125
  %v127 = vrot.slane %v41, %v126
  %v128 = vlaneseq
  %v129 = vshrl.u32 %v128, 7
  %v130 = vsub.s32 3, %v129
  %v131 = vrot.slane %v41, %v130
  %v138 = vcombine.high %v46, %v46
  %v139 = vcombine.high %v47, %v47
  %v142 = vmul.f32 %v119, %v46
  %v143 = vmul.f32 %v123, %v138
  %v144 = vmul.f32 %v127, %v47
  %v145 = vmul.f32 %v131, %v139
  %v146 = vadd.f32 %v111, %v142
  %v147 = vadd.f32 %v112, %v143
  %v148 = vadd.f32 %v113, %v144
  %v149 = vadd.f32 %v114, %v145
  %v150 = vld [vmem:[%s7] sm:$0xff]
  %v151 = vld [vmem:[%s7 + $0x8] sm:$0xff]
  %v152 = vld [vmem:[%s7 + $0x10] sm:$0xff]
  %v153 = vld [vmem:[%s7 + $0x18] sm:$0xff]
  %v154 = vld [vmem:[%s7 + $0x20] sm:$0xff]
  %v155 = vld [vmem:[%s7 + $0x28] sm:$0xff]
  %v156 = vld [vmem:[%s7 + $0x30] sm:$0xff]
  %v157 = vld [vmem:[%s7 + $0x38] sm:$0xff]
  %v158 = vld [vmem:[%s7 + $0x40] sm:$0xff]
  %v159 = vld [vmem:[%s7 + $0x48] sm:$0xff]
  %v160 = vld [vmem:[%s7 + $0x50] sm:$0xff]
  %v161 = vld [vmem:[%s7 + $0x58] sm:$0xff]
  %v162 = vld [vmem:[%s7 + $0x60] sm:$0xff]
  %v163 = vld [vmem:[%s7 + $0x68] sm:$0xff]
  %v164 = vld [vmem:[%s7 + $0x70] sm:$0xff]
  %v165 = vld [vmem:[%s7 + $0x78] sm:$0xff]
  %v166 = vld [vmem:[%s8] sm:$0xff]
  %v167 = vld [vmem:[%s8 + $0x8] sm:$0xff]
  %v168 = vld [vmem:[%s8 + $0x10] sm:$0xff]
  %v169 = vld [vmem:[%s8 + $0x18] sm:$0xff]
  %v170 = vld [vmem:[%s8 + $0x20] sm:$0xff]
  %v171 = vld [vmem:[%s8 + $0x28] sm:$0xff]
  %v172 = vld [vmem:[%s8 + $0x30] sm:$0xff]
  %v173 = vld [vmem:[%s8 + $0x38] sm:$0xff]
  %v174 = vld [vmem:[%s8 + $0x40] sm:$0xff]
  %v175 = vld [vmem:[%s8 + $0x48] sm:$0xff]
  %v176 = vld [vmem:[%s8 + $0x50] sm:$0xff]
  %v177 = vld [vmem:[%s8 + $0x58] sm:$0xff]
  %v178 = vld [vmem:[%s8 + $0x60] sm:$0xff]
  %v179 = vld [vmem:[%s8 + $0x68] sm:$0xff]
  %v180 = vld [vmem:[%s8 + $0x70] sm:$0xff]
  %v181 = vld [vmem:[%s8 + $0x78] sm:$0xff]
  %vm182 = vcmask 31744
  %v184 = vsel %vm182, %v166, 0
  %v187 = vsel %vm182, %v167, 0
  %v190 = vsel %vm182, %v168, 0
  %v193 = vsel %vm182, %v169, 0
  %v196 = vsel %vm182, %v170, 0
  %v199 = vsel %vm182, %v171, 0
  %v202 = vsel %vm182, %v172, 0
  %v205 = vsel %vm182, %v173, 0
  %v208 = vsel %vm182, %v174, 0
  %v211 = vsel %vm182, %v175, 0
  %v214 = vsel %vm182, %v176, 0
  %v217 = vsel %vm182, %v177, 0
  %v220 = vsel %vm182, %v178, 0
  %v223 = vsel %vm182, %v179, 0
  %v226 = vsel %vm182, %v180, 0
  %v229 = vsel %vm182, %v181, 0
  %vm231 = vcmask 1043456
  %v232 = vsel %vm231, %v44, 0
  %v234 = vsel %vm231, %v103, 0
  %v236 = vsel %vm231, %v45, 0
  %v238 = vsel %vm231, %v104, 0
  %240 = vmatprep.subr.mxu0 0.0
  %241 = vmatpush1.msra.mxu0 0.0
  %242 = vmatprep.subr.mxu0 0.0
  %243 = vmatpush1.msra.mxu0 0.0
  %244 = vmatprep.subr.mxu0 0.0
  %245 = vmatpush1.msra.mxu0 0.0
  %246 = vmatprep.subr.mxu0 0.0
  %247 = vmatpush1.msra.mxu0 0.0
  %248 = vmatprep.subr.mxu0 0.0
  %249 = vmatpush1.msra.mxu0 0.0
  %250 = vmatprep.subr.mxu0 0.0
  %251 = vmatpush1.msra.mxu0 0.0
  %252 = vmatprep.subr.mxu0 0.0
  %253 = vmatpush1.msra.mxu0 0.0
  %254 = vmatprep.subr.mxu0 0.0
  %255 = vmatpush1.msra.mxu0 0.0
  %256 = vmatprep.subr.mxu0 0.0
  %257 = vmatpush1.msra.mxu0 0.0
  %258 = vmatprep.subr.mxu0 0.0
  %259 = vmatpush1.msra.mxu0 0.0
  %260 = vmatprep.subr.mxu0 0.0
  %261 = vmatpush1.msra.mxu0 0.0
  %262 = vmatprep.subr.mxu0 0.0
  %263 = vmatpush1.msra.mxu0 0.0
  %264 = vmatprep.subr.mxu0 0.0
  %265 = vmatpush1.msra.mxu0 0.0
  %266 = vmatprep.subr.mxu0 0.0
  %267 = vmatpush1.msra.mxu0 0.0
  %268 = vmatprep.subr.mxu0 0.0
  %269 = vmatpush1.msra.mxu0 0.0
  %270 = vmatprep.subr.mxu0 %v234
  %271 = vmatpush1.msra.mxu0 %v232
  %272 = vmatprep.subr.mxu0 0.0
  %273 = vmatpush2.msra.mxu0 0.0
  %274 = vmatprep.subr.mxu0 0.0
  %275 = vmatpush2.msra.mxu0 0.0
  %276 = vmatprep.subr.mxu0 0.0
  %277 = vmatpush2.msra.mxu0 0.0
  %278 = vmatprep.subr.mxu0 0.0
  %279 = vmatpush2.msra.mxu0 0.0
  %280 = vmatprep.subr.mxu0 0.0
  %281 = vmatpush2.msra.mxu0 0.0
  %282 = vmatprep.subr.mxu0 0.0
  %283 = vmatpush2.msra.mxu0 0.0
  %284 = vmatprep.subr.mxu0 0.0
  %285 = vmatpush2.msra.mxu0 0.0
  %286 = vmatprep.subr.mxu0 0.0
  %287 = vmatpush2.msra.mxu0 0.0
  %288 = vmatprep.subr.mxu0 0.0
  %289 = vmatpush2.msra.mxu0 0.0
  %290 = vmatprep.subr.mxu0 0.0
  %291 = vmatpush2.msra.mxu0 0.0
  %292 = vmatprep.subr.mxu0 0.0
  %293 = vmatpush2.msra.mxu0 0.0
  %294 = vmatprep.subr.mxu0 0.0
  %295 = vmatpush2.msra.mxu0 0.0
  %296 = vmatprep.subr.mxu0 0.0
  %297 = vmatpush2.msra.mxu0 0.0
  %298 = vmatprep.subr.mxu0 0.0
  %299 = vmatpush2.msra.mxu0 0.0
  %300 = vmatprep.subr.mxu0 0.0
  %301 = vmatpush2.msra.mxu0 0.0
  %302 = vmatprep.subr.mxu0 0.0
  %303 = vmatpush2.msra.mxu0 0.0
  %304 = vmatprep.mubr.f32.mxu0 0.0
  %305 = vmatmul.mubr.f32.gmra.mxu0 %v184
  %v306 = vpop.f32.mrf.mxu0
  %v307 = vadd.f32 0.0, %v306
  %v308 = vpop.f32.mrf.mxu0
  %v309 = vadd.f32 0.0, %v308
  %310 = vmatprep.mubr.f32.mxu0 0.0
  %311 = vmatmul.mubr.f32.gmra.mxu0 %v187
  %v312 = vpop.f32.mrf.mxu0
  %v313 = vadd.f32 0.0, %v312
  %v314 = vpop.f32.mrf.mxu0
  %v315 = vadd.f32 0.0, %v314
  %316 = vmatprep.mubr.f32.mxu0 0.0
  %317 = vmatmul.mubr.f32.gmra.mxu0 %v190
  %v318 = vpop.f32.mrf.mxu0
  %v319 = vadd.f32 0.0, %v318
  %v320 = vpop.f32.mrf.mxu0
  %v321 = vadd.f32 0.0, %v320
  %322 = vmatprep.mubr.f32.mxu0 0.0
  %323 = vmatmul.mubr.f32.gmra.mxu0 %v193
  %v324 = vpop.f32.mrf.mxu0
  %v325 = vadd.f32 0.0, %v324
  %v326 = vpop.f32.mrf.mxu0
  %v327 = vadd.f32 0.0, %v326
  %328 = vmatprep.mubr.f32.mxu0 0.0
  %329 = vmatmul.mubr.f32.gmra.mxu0 %v196
  %v330 = vpop.f32.mrf.mxu0
  %v331 = vadd.f32 0.0, %v330
  %v332 = vpop.f32.mrf.mxu0
  %v333 = vadd.f32 0.0, %v332
  %334 = vmatprep.mubr.f32.mxu0 0.0
  %335 = vmatmul.mubr.f32.gmra.mxu0 %v199
  %v336 = vpop.f32.mrf.mxu0
  %v337 = vadd.f32 0.0, %v336
  %v338 = vpop.f32.mrf.mxu0
  %v339 = vadd.f32 0.0, %v338
  %340 = vmatprep.mubr.f32.mxu0 0.0
  %341 = vmatmul.mubr.f32.gmra.mxu0 %v202
  %v342 = vpop.f32.mrf.mxu0
  %v343 = vadd.f32 0.0, %v342
  %v344 = vpop.f32.mrf.mxu0
  %v345 = vadd.f32 0.0, %v344
  %346 = vmatprep.mubr.f32.mxu0 0.0
  %347 = vmatmul.mubr.f32.gmra.mxu0 %v205
  %v348 = vpop.f32.mrf.mxu0
  %v349 = vadd.f32 0.0, %v348
  %v350 = vpop.f32.mrf.mxu0
  %v351 = vadd.f32 0.0, %v350
  %352 = vmatprep.mubr.f32.mxu0 0.0
  %353 = vmatmul.mubr.f32.gmra.mxu0 %v208
  %v354 = vpop.f32.mrf.mxu0
  %v355 = vadd.f32 0.0, %v354
  %v356 = vpop.f32.mrf.mxu0
  %v357 = vadd.f32 0.0, %v356
  %358 = vmatprep.mubr.f32.mxu0 0.0
  %359 = vmatmul.mubr.f32.gmra.mxu0 %v211
  %v360 = vpop.f32.mrf.mxu0
  %v361 = vadd.f32 0.0, %v360
  %v362 = vpop.f32.mrf.mxu0
  %v363 = vadd.f32 0.0, %v362
  %364 = vmatprep.mubr.f32.mxu0 0.0
  %365 = vmatmul.mubr.f32.gmra.mxu0 %v214
  %v366 = vpop.f32.mrf.mxu0
  %v367 = vadd.f32 0.0, %v366
  %v368 = vpop.f32.mrf.mxu0
  %v369 = vadd.f32 0.0, %v368
  %370 = vmatprep.mubr.f32.mxu0 0.0
  %371 = vmatmul.mubr.f32.gmra.mxu0 %v217
  %v372 = vpop.f32.mrf.mxu0
  %v373 = vadd.f32 0.0, %v372
  %v374 = vpop.f32.mrf.mxu0
  %v375 = vadd.f32 0.0, %v374
  %376 = vmatprep.mubr.f32.mxu0 0.0
  %377 = vmatmul.mubr.f32.gmra.mxu0 %v220
  %v378 = vpop.f32.mrf.mxu0
  %v379 = vadd.f32 0.0, %v378
  %v380 = vpop.f32.mrf.mxu0
  %v381 = vadd.f32 0.0, %v380
  %382 = vmatprep.mubr.f32.mxu0 0.0
  %383 = vmatmul.mubr.f32.gmra.mxu0 %v223
  %v384 = vpop.f32.mrf.mxu0
  %v385 = vadd.f32 0.0, %v384
  %v386 = vpop.f32.mrf.mxu0
  %v387 = vadd.f32 0.0, %v386
  %388 = vmatprep.mubr.f32.mxu0 0.0
  %389 = vmatmul.mubr.f32.gmra.mxu0 %v226
  %v390 = vpop.f32.mrf.mxu0
  %v391 = vadd.f32 0.0, %v390
  %v392 = vpop.f32.mrf.mxu0
  %v393 = vadd.f32 0.0, %v392
  %394 = vmatprep.mubr.f32.mxu0 0.0
  %395 = vmatmul.mubr.f32.gmra.mxu0 %v229
  %v396 = vpop.f32.mrf.mxu0
  %v397 = vadd.f32 0.0, %v396
  %v398 = vpop.f32.mrf.mxu0
  %v399 = vadd.f32 0.0, %v398
  %400 = vdwg.mxu0
  %401 = vmatprep.subr.mxu0 0.0
  %402 = vmatpush1.msra.mxu0 0.0
  %403 = vmatprep.subr.mxu0 0.0
  %404 = vmatpush1.msra.mxu0 0.0
  %405 = vmatprep.subr.mxu0 0.0
  %406 = vmatpush1.msra.mxu0 0.0
  %407 = vmatprep.subr.mxu0 0.0
  %408 = vmatpush1.msra.mxu0 0.0
  %409 = vmatprep.subr.mxu0 0.0
  %410 = vmatpush1.msra.mxu0 0.0
  %411 = vmatprep.subr.mxu0 0.0
  %412 = vmatpush1.msra.mxu0 0.0
  %413 = vmatprep.subr.mxu0 0.0
  %414 = vmatpush1.msra.mxu0 0.0
  %415 = vmatprep.subr.mxu0 0.0
  %416 = vmatpush1.msra.mxu0 0.0
  %417 = vmatprep.subr.mxu0 0.0
  %418 = vmatpush1.msra.mxu0 0.0
  %419 = vmatprep.subr.mxu0 0.0
  %420 = vmatpush1.msra.mxu0 0.0
  %421 = vmatprep.subr.mxu0 0.0
  %422 = vmatpush1.msra.mxu0 0.0
  %423 = vmatprep.subr.mxu0 0.0
  %424 = vmatpush1.msra.mxu0 0.0
  %425 = vmatprep.subr.mxu0 0.0
  %426 = vmatpush1.msra.mxu0 0.0
  %427 = vmatprep.subr.mxu0 0.0
  %428 = vmatpush1.msra.mxu0 0.0
  %429 = vmatprep.subr.mxu0 0.0
  %430 = vmatpush1.msra.mxu0 0.0
  %431 = vmatprep.subr.mxu0 %v238
  %432 = vmatpush1.msra.mxu0 %v236
  %433 = vmatprep.subr.mxu0 0.0
  %434 = vmatpush2.msra.mxu0 0.0
  %435 = vmatprep.subr.mxu0 0.0
  %436 = vmatpush2.msra.mxu0 0.0
  %437 = vmatprep.subr.mxu0 0.0
  %438 = vmatpush2.msra.mxu0 0.0
  %439 = vmatprep.subr.mxu0 0.0
  %440 = vmatpush2.msra.mxu0 0.0
  %441 = vmatprep.subr.mxu0 0.0
  %442 = vmatpush2.msra.mxu0 0.0
  %443 = vmatprep.subr.mxu0 0.0
  %444 = vmatpush2.msra.mxu0 0.0
  %445 = vmatprep.subr.mxu0 0.0
  %446 = vmatpush2.msra.mxu0 0.0
  %447 = vmatprep.subr.mxu0 0.0
  %448 = vmatpush2.msra.mxu0 0.0
  %449 = vmatprep.subr.mxu0 0.0
  %450 = vmatpush2.msra.mxu0 0.0
  %451 = vmatprep.subr.mxu0 0.0
  %452 = vmatpush2.msra.mxu0 0.0
  %453 = vmatprep.subr.mxu0 0.0
  %454 = vmatpush2.msra.mxu0 0.0
  %455 = vmatprep.subr.mxu0 0.0
  %456 = vmatpush2.msra.mxu0 0.0
  %457 = vmatprep.subr.mxu0 0.0
  %458 = vmatpush2.msra.mxu0 0.0
  %459 = vmatprep.subr.mxu0 0.0
  %460 = vmatpush2.msra.mxu0 0.0
  %461 = vmatprep.subr.mxu0 0.0
  %462 = vmatpush2.msra.mxu0 0.0
  %463 = vmatprep.subr.mxu0 0.0
  %464 = vmatpush2.msra.mxu0 0.0
  %465 = vmatprep.mubr.f32.mxu0 0.0
  %466 = vmatmul.mubr.f32.gmra.mxu0 %v184
  %v467 = vpop.f32.mrf.mxu0
  %v468 = vadd.f32 0.0, %v467
  %v469 = vpop.f32.mrf.mxu0
  %v470 = vadd.f32 0.0, %v469
  %471 = vmatprep.mubr.f32.mxu0 0.0
  %472 = vmatmul.mubr.f32.gmra.mxu0 %v187
  %v473 = vpop.f32.mrf.mxu0
  %v474 = vadd.f32 0.0, %v473
  %v475 = vpop.f32.mrf.mxu0
  %v476 = vadd.f32 0.0, %v475
  %477 = vmatprep.mubr.f32.mxu0 0.0
  %478 = vmatmul.mubr.f32.gmra.mxu0 %v190
  %v479 = vpop.f32.mrf.mxu0
  %v480 = vadd.f32 0.0, %v479
  %v481 = vpop.f32.mrf.mxu0
  %v482 = vadd.f32 0.0, %v481
  %483 = vmatprep.mubr.f32.mxu0 0.0
  %484 = vmatmul.mubr.f32.gmra.mxu0 %v193
  %v485 = vpop.f32.mrf.mxu0
  %v486 = vadd.f32 0.0, %v485
  %v487 = vpop.f32.mrf.mxu0
  %v488 = vadd.f32 0.0, %v487
  %489 = vmatprep.mubr.f32.mxu0 0.0
  %490 = vmatmul.mubr.f32.gmra.mxu0 %v196
  %v491 = vpop.f32.mrf.mxu0
  %v492 = vadd.f32 0.0, %v491
  %v493 = vpop.f32.mrf.mxu0
  %v494 = vadd.f32 0.0, %v493
  %495 = vmatprep.mubr.f32.mxu0 0.0
  %496 = vmatmul.mubr.f32.gmra.mxu0 %v199
  %v497 = vpop.f32.mrf.mxu0
  %v498 = vadd.f32 0.0, %v497
  %v499 = vpop.f32.mrf.mxu0
  %v500 = vadd.f32 0.0, %v499
  %501 = vmatprep.mubr.f32.mxu0 0.0
  %502 = vmatmul.mubr.f32.gmra.mxu0 %v202
  %v503 = vpop.f32.mrf.mxu0
  %v504 = vadd.f32 0.0, %v503
  %v505 = vpop.f32.mrf.mxu0
  %v506 = vadd.f32 0.0, %v505
  %507 = vmatprep.mubr.f32.mxu0 0.0
  %508 = vmatmul.mubr.f32.gmra.mxu0 %v205
  %v509 = vpop.f32.mrf.mxu0
  %v510 = vadd.f32 0.0, %v509
  %v511 = vpop.f32.mrf.mxu0
  %v512 = vadd.f32 0.0, %v511
  %513 = vmatprep.mubr.f32.mxu0 0.0
  %514 = vmatmul.mubr.f32.gmra.mxu0 %v208
  %v515 = vpop.f32.mrf.mxu0
  %v516 = vadd.f32 0.0, %v515
  %v517 = vpop.f32.mrf.mxu0
  %v518 = vadd.f32 0.0, %v517
  %519 = vmatprep.mubr.f32.mxu0 0.0
  %520 = vmatmul.mubr.f32.gmra.mxu0 %v211
  %v521 = vpop.f32.mrf.mxu0
  %v522 = vadd.f32 0.0, %v521
  %v523 = vpop.f32.mrf.mxu0
  %v524 = vadd.f32 0.0, %v523
  %525 = vmatprep.mubr.f32.mxu0 0.0
  %526 = vmatmul.mubr.f32.gmra.mxu0 %v214
  %v527 = vpop.f32.mrf.mxu0
  %v528 = vadd.f32 0.0, %v527
  %v529 = vpop.f32.mrf.mxu0
  %v530 = vadd.f32 0.0, %v529
  %531 = vmatprep.mubr.f32.mxu0 0.0
  %532 = vmatmul.mubr.f32.gmra.mxu0 %v217
  %v533 = vpop.f32.mrf.mxu0
  %v534 = vadd.f32 0.0, %v533
  %v535 = vpop.f32.mrf.mxu0
  %v536 = vadd.f32 0.0, %v535
  %537 = vmatprep.mubr.f32.mxu0 0.0
  %538 = vmatmul.mubr.f32.gmra.mxu0 %v220
  %v539 = vpop.f32.mrf.mxu0
  %v540 = vadd.f32 0.0, %v539
  %v541 = vpop.f32.mrf.mxu0
  %v542 = vadd.f32 0.0, %v541
  %543 = vmatprep.mubr.f32.mxu0 0.0
  %544 = vmatmul.mubr.f32.gmra.mxu0 %v223
  %v545 = vpop.f32.mrf.mxu0
  %v546 = vadd.f32 0.0, %v545
  %v547 = vpop.f32.mrf.mxu0
  %v548 = vadd.f32 0.0, %v547
  %549 = vmatprep.mubr.f32.mxu0 0.0
  %550 = vmatmul.mubr.f32.gmra.mxu0 %v226
  %v551 = vpop.f32.mrf.mxu0
  %v552 = vadd.f32 0.0, %v551
  %v553 = vpop.f32.mrf.mxu0
  %v554 = vadd.f32 0.0, %v553
  %555 = vmatprep.mubr.f32.mxu0 0.0
  %556 = vmatmul.mubr.f32.gmra.mxu0 %v229
  %v557 = vpop.f32.mrf.mxu0
  %v558 = vadd.f32 0.0, %v557
  %v559 = vpop.f32.mrf.mxu0
  %v560 = vadd.f32 0.0, %v559
  %561 = vdwg.mxu0
  %v563 = vsel %vm182, %v150, 0
  %v566 = vsel %vm182, %v151, 0
  %v569 = vsel %vm182, %v152, 0
  %v572 = vsel %vm182, %v153, 0
  %v575 = vsel %vm182, %v154, 0
  %v578 = vsel %vm182, %v155, 0
  %v581 = vsel %vm182, %v156, 0
  %v584 = vsel %vm182, %v157, 0
  %v587 = vsel %vm182, %v158, 0
  %v590 = vsel %vm182, %v159, 0
  %v593 = vsel %vm182, %v160, 0
  %v596 = vsel %vm182, %v161, 0
  %v599 = vsel %vm182, %v162, 0
  %v602 = vsel %vm182, %v163, 0
  %v605 = vsel %vm182, %v164, 0
  %v608 = vsel %vm182, %v165, 0
  %v611 = vsel %vm231, %v146, 0
  %v614 = vsel %vm231, %v147, 0
  %v617 = vsel %vm231, %v148, 0
  %v620 = vsel %vm231, %v149, 0
  %622 = vmatprep.subr.mxu0 0.0
  %623 = vmatpush1.msra.mxu0 0.0
  %624 = vmatprep.subr.mxu0 0.0
  %625 = vmatpush1.msra.mxu0 0.0
  %626 = vmatprep.subr.mxu0 0.0
  %627 = vmatpush1.msra.mxu0 0.0
  %628 = vmatprep.subr.mxu0 0.0
  %629 = vmatpush1.msra.mxu0 0.0
  %630 = vmatprep.subr.mxu0 0.0
  %631 = vmatpush1.msra.mxu0 0.0
  %632 = vmatprep.subr.mxu0 0.0
  %633 = vmatpush1.msra.mxu0 0.0
  %634 = vmatprep.subr.mxu0 0.0
  %635 = vmatpush1.msra.mxu0 0.0
  %636 = vmatprep.subr.mxu0 0.0
  %637 = vmatpush1.msra.mxu0 0.0
  %638 = vmatprep.subr.mxu0 0.0
  %639 = vmatpush1.msra.mxu0 0.0
  %640 = vmatprep.subr.mxu0 0.0
  %641 = vmatpush1.msra.mxu0 0.0
  %642 = vmatprep.subr.mxu0 0.0
  %643 = vmatpush1.msra.mxu0 0.0
  %644 = vmatprep.subr.mxu0 0.0
  %645 = vmatpush1.msra.mxu0 0.0
  %646 = vmatprep.subr.mxu0 0.0
  %647 = vmatpush1.msra.mxu0 0.0
  %648 = vmatprep.subr.mxu0 0.0
  %649 = vmatpush1.msra.mxu0 0.0
  %650 = vmatprep.subr.mxu0 0.0
  %651 = vmatpush1.msra.mxu0 0.0
  %652 = vmatprep.subr.mxu0 %v614
  %653 = vmatpush1.msra.mxu0 %v611
  %654 = vmatprep.subr.mxu0 0.0
  %655 = vmatpush2.msra.mxu0 0.0
  %656 = vmatprep.subr.mxu0 0.0
  %657 = vmatpush2.msra.mxu0 0.0
  %658 = vmatprep.subr.mxu0 0.0
  %659 = vmatpush2.msra.mxu0 0.0
  %660 = vmatprep.subr.mxu0 0.0
  %661 = vmatpush2.msra.mxu0 0.0
  %662 = vmatprep.subr.mxu0 0.0
  %663 = vmatpush2.msra.mxu0 0.0
  %664 = vmatprep.subr.mxu0 0.0
  %665 = vmatpush2.msra.mxu0 0.0
  %666 = vmatprep.subr.mxu0 0.0
  %667 = vmatpush2.msra.mxu0 0.0
  %668 = vmatprep.subr.mxu0 0.0
  %669 = vmatpush2.msra.mxu0 0.0
  %670 = vmatprep.subr.mxu0 0.0
  %671 = vmatpush2.msra.mxu0 0.0
  %672 = vmatprep.subr.mxu0 0.0
  %673 = vmatpush2.msra.mxu0 0.0
  %674 = vmatprep.subr.mxu0 0.0
  %675 = vmatpush2.msra.mxu0 0.0
  %676 = vmatprep.subr.mxu0 0.0
  %677 = vmatpush2.msra.mxu0 0.0
  %678 = vmatprep.subr.mxu0 0.0
  %679 = vmatpush2.msra.mxu0 0.0
  %680 = vmatprep.subr.mxu0 0.0
  %681 = vmatpush2.msra.mxu0 0.0
  %682 = vmatprep.subr.mxu0 0.0
  %683 = vmatpush2.msra.mxu0 0.0
  %684 = vmatprep.subr.mxu0 0.0
  %685 = vmatpush2.msra.mxu0 0.0
  %686 = vmatprep.mubr.f32.mxu0 0.0
  %687 = vmatmul.mubr.f32.gmra.mxu0 %v563
  %v688 = vpop.f32.mrf.mxu0
  %v689 = vadd.f32 %v307, %v688
  %v690 = vpop.f32.mrf.mxu0
  %v691 = vadd.f32 %v309, %v690
  %692 = vmatprep.mubr.f32.mxu0 0.0
  %693 = vmatmul.mubr.f32.gmra.mxu0 %v566
  %v694 = vpop.f32.mrf.mxu0
  %v695 = vadd.f32 %v313, %v694
  %v696 = vpop.f32.mrf.mxu0
  %v697 = vadd.f32 %v315, %v696
  %698 = vmatprep.mubr.f32.mxu0 0.0
  %699 = vmatmul.mubr.f32.gmra.mxu0 %v569
  %v700 = vpop.f32.mrf.mxu0
  %v701 = vadd.f32 %v319, %v700
  %v702 = vpop.f32.mrf.mxu0
  %v703 = vadd.f32 %v321, %v702
  %704 = vmatprep.mubr.f32.mxu0 0.0
  %705 = vmatmul.mubr.f32.gmra.mxu0 %v572
  %v706 = vpop.f32.mrf.mxu0
  %v707 = vadd.f32 %v325, %v706
  %v708 = vpop.f32.mrf.mxu0
  %v709 = vadd.f32 %v327, %v708
  %710 = vmatprep.mubr.f32.mxu0 0.0
  %711 = vmatmul.mubr.f32.gmra.mxu0 %v575
  %v712 = vpop.f32.mrf.mxu0
  %v713 = vadd.f32 %v331, %v712
  %v714 = vpop.f32.mrf.mxu0
  %v715 = vadd.f32 %v333, %v714
  %716 = vmatprep.mubr.f32.mxu0 0.0
  %717 = vmatmul.mubr.f32.gmra.mxu0 %v578
  %v718 = vpop.f32.mrf.mxu0
  %v719 = vadd.f32 %v337, %v718
  %v720 = vpop.f32.mrf.mxu0
  %v721 = vadd.f32 %v339, %v720
  %722 = vmatprep.mubr.f32.mxu0 0.0
  %723 = vmatmul.mubr.f32.gmra.mxu0 %v581
  %v724 = vpop.f32.mrf.mxu0
  %v725 = vadd.f32 %v343, %v724
  %v726 = vpop.f32.mrf.mxu0
  %v727 = vadd.f32 %v345, %v726
  %728 = vmatprep.mubr.f32.mxu0 0.0
  %729 = vmatmul.mubr.f32.gmra.mxu0 %v584
  %v730 = vpop.f32.mrf.mxu0
  %v731 = vadd.f32 %v349, %v730
  %v732 = vpop.f32.mrf.mxu0
  %v733 = vadd.f32 %v351, %v732
  %734 = vmatprep.mubr.f32.mxu0 0.0
  %735 = vmatmul.mubr.f32.gmra.mxu0 %v587
  %v736 = vpop.f32.mrf.mxu0
  %v737 = vadd.f32 %v355, %v736
  %v738 = vpop.f32.mrf.mxu0
  %v739 = vadd.f32 %v357, %v738
  %740 = vmatprep.mubr.f32.mxu0 0.0
  %741 = vmatmul.mubr.f32.gmra.mxu0 %v590
  %v742 = vpop.f32.mrf.mxu0
  %v743 = vadd.f32 %v361, %v742
  %v744 = vpop.f32.mrf.mxu0
  %v745 = vadd.f32 %v363, %v744
  %746 = vmatprep.mubr.f32.mxu0 0.0
  %747 = vmatmul.mubr.f32.gmra.mxu0 %v593
  %v748 = vpop.f32.mrf.mxu0
  %v749 = vadd.f32 %v367, %v748
  %v750 = vpop.f32.mrf.mxu0
  %v751 = vadd.f32 %v369, %v750
  %752 = vmatprep.mubr.f32.mxu0 0.0
  %753 = vmatmul.mubr.f32.gmra.mxu0 %v596
  %v754 = vpop.f32.mrf.mxu0
  %v755 = vadd.f32 %v373, %v754
  %v756 = vpop.f32.mrf.mxu0
  %v757 = vadd.f32 %v375, %v756
  %758 = vmatprep.mubr.f32.mxu0 0.0
  %759 = vmatmul.mubr.f32.gmra.mxu0 %v599
  %v760 = vpop.f32.mrf.mxu0
  %v761 = vadd.f32 %v379, %v760
  %v762 = vpop.f32.mrf.mxu0
  %v763 = vadd.f32 %v381, %v762
  %764 = vmatprep.mubr.f32.mxu0 0.0
  %765 = vmatmul.mubr.f32.gmra.mxu0 %v602
  %v766 = vpop.f32.mrf.mxu0
  %v767 = vadd.f32 %v385, %v766
  %v768 = vpop.f32.mrf.mxu0
  %v769 = vadd.f32 %v387, %v768
  %770 = vmatprep.mubr.f32.mxu0 0.0
  %771 = vmatmul.mubr.f32.gmra.mxu0 %v605
  %v772 = vpop.f32.mrf.mxu0
  %v773 = vadd.f32 %v391, %v772
  %v774 = vpop.f32.mrf.mxu0
  %v775 = vadd.f32 %v393, %v774
  %776 = vmatprep.mubr.f32.mxu0 0.0
  %777 = vmatmul.mubr.f32.gmra.mxu0 %v608
  %v778 = vpop.f32.mrf.mxu0
  %v779 = vadd.f32 %v397, %v778
  %v780 = vpop.f32.mrf.mxu0
  %v781 = vadd.f32 %v399, %v780
  %782 = vdwg.mxu0
  %783 = vmatprep.subr.mxu0 0.0
  %784 = vmatpush1.msra.mxu0 0.0
  %785 = vmatprep.subr.mxu0 0.0
  %786 = vmatpush1.msra.mxu0 0.0
  %787 = vmatprep.subr.mxu0 0.0
  %788 = vmatpush1.msra.mxu0 0.0
  %789 = vmatprep.subr.mxu0 0.0
  %790 = vmatpush1.msra.mxu0 0.0
  %791 = vmatprep.subr.mxu0 0.0
  %792 = vmatpush1.msra.mxu0 0.0
  %793 = vmatprep.subr.mxu0 0.0
  %794 = vmatpush1.msra.mxu0 0.0
  %795 = vmatprep.subr.mxu0 0.0
  %796 = vmatpush1.msra.mxu0 0.0
  %797 = vmatprep.subr.mxu0 0.0
  %798 = vmatpush1.msra.mxu0 0.0
  %799 = vmatprep.subr.mxu0 0.0
  %800 = vmatpush1.msra.mxu0 0.0
  %801 = vmatprep.subr.mxu0 0.0
  %802 = vmatpush1.msra.mxu0 0.0
  %803 = vmatprep.subr.mxu0 0.0
  %804 = vmatpush1.msra.mxu0 0.0
  %805 = vmatprep.subr.mxu0 0.0
  %806 = vmatpush1.msra.mxu0 0.0
  %807 = vmatprep.subr.mxu0 0.0
  %808 = vmatpush1.msra.mxu0 0.0
  %809 = vmatprep.subr.mxu0 0.0
  %810 = vmatpush1.msra.mxu0 0.0
  %811 = vmatprep.subr.mxu0 0.0
  %812 = vmatpush1.msra.mxu0 0.0
  %813 = vmatprep.subr.mxu0 %v620
  %814 = vmatpush1.msra.mxu0 %v617
  %815 = vmatprep.subr.mxu0 0.0
  %816 = vmatpush2.msra.mxu0 0.0
  %817 = vmatprep.subr.mxu0 0.0
  %818 = vmatpush2.msra.mxu0 0.0
  %819 = vmatprep.subr.mxu0 0.0
  %820 = vmatpush2.msra.mxu0 0.0
  %821 = vmatprep.subr.mxu0 0.0
  %822 = vmatpush2.msra.mxu0 0.0
  %823 = vmatprep.subr.mxu0 0.0
  %824 = vmatpush2.msra.mxu0 0.0
  %825 = vmatprep.subr.mxu0 0.0
  %826 = vmatpush2.msra.mxu0 0.0
  %827 = vmatprep.subr.mxu0 0.0
  %828 = vmatpush2.msra.mxu0 0.0
  %829 = vmatprep.subr.mxu0 0.0
  %830 = vmatpush2.msra.mxu0 0.0
  %831 = vmatprep.subr.mxu0 0.0
  %832 = vmatpush2.msra.mxu0 0.0
  %833 = vmatprep.subr.mxu0 0.0
  %834 = vmatpush2.msra.mxu0 0.0
  %835 = vmatprep.subr.mxu0 0.0
  %836 = vmatpush2.msra.mxu0 0.0
  %837 = vmatprep.subr.mxu0 0.0
  %838 = vmatpush2.msra.mxu0 0.0
  %839 = vmatprep.subr.mxu0 0.0
  %840 = vmatpush2.msra.mxu0 0.0
  %841 = vmatprep.subr.mxu0 0.0
  %842 = vmatpush2.msra.mxu0 0.0
  %843 = vmatprep.subr.mxu0 0.0
  %844 = vmatpush2.msra.mxu0 0.0
  %845 = vmatprep.subr.mxu0 0.0
  %846 = vmatpush2.msra.mxu0 0.0
  %847 = vmatprep.mubr.f32.mxu0 0.0
  %848 = vmatmul.mubr.f32.gmra.mxu0 %v563
  %v849 = vpop.f32.mrf.mxu0
  %v850 = vadd.f32 %v468, %v849
  %v851 = vpop.f32.mrf.mxu0
  %v852 = vadd.f32 %v470, %v851
  %853 = vmatprep.mubr.f32.mxu0 0.0
  %854 = vmatmul.mubr.f32.gmra.mxu0 %v566
  %v855 = vpop.f32.mrf.mxu0
  %v856 = vadd.f32 %v474, %v855
  %v857 = vpop.f32.mrf.mxu0
  %v858 = vadd.f32 %v476, %v857
  %859 = vmatprep.mubr.f32.mxu0 0.0
  %860 = vmatmul.mubr.f32.gmra.mxu0 %v569
  %v861 = vpop.f32.mrf.mxu0
  %v862 = vadd.f32 %v480, %v861
  %v863 = vpop.f32.mrf.mxu0
  %v864 = vadd.f32 %v482, %v863
  %865 = vmatprep.mubr.f32.mxu0 0.0
  %866 = vmatmul.mubr.f32.gmra.mxu0 %v572
  %v867 = vpop.f32.mrf.mxu0
  %v868 = vadd.f32 %v486, %v867
  %v869 = vpop.f32.mrf.mxu0
  %v870 = vadd.f32 %v488, %v869
  %871 = vmatprep.mubr.f32.mxu0 0.0
  %872 = vmatmul.mubr.f32.gmra.mxu0 %v575
  %v873 = vpop.f32.mrf.mxu0
  %v874 = vadd.f32 %v492, %v873
  %v875 = vpop.f32.mrf.mxu0
  %v876 = vadd.f32 %v494, %v875
  %877 = vmatprep.mubr.f32.mxu0 0.0
  %878 = vmatmul.mubr.f32.gmra.mxu0 %v578
  %v879 = vpop.f32.mrf.mxu0
  %v880 = vadd.f32 %v498, %v879
  %v881 = vpop.f32.mrf.mxu0
  %v882 = vadd.f32 %v500, %v881
  %883 = vmatprep.mubr.f32.mxu0 0.0
  %884 = vmatmul.mubr.f32.gmra.mxu0 %v581
  %v885 = vpop.f32.mrf.mxu0
  %v886 = vadd.f32 %v504, %v885
  %v887 = vpop.f32.mrf.mxu0
  %v888 = vadd.f32 %v506, %v887
  %889 = vmatprep.mubr.f32.mxu0 0.0
  %890 = vmatmul.mubr.f32.gmra.mxu0 %v584
  %v891 = vpop.f32.mrf.mxu0
  %v892 = vadd.f32 %v510, %v891
  %v893 = vpop.f32.mrf.mxu0
  %v894 = vadd.f32 %v512, %v893
  %895 = vmatprep.mubr.f32.mxu0 0.0
  %896 = vmatmul.mubr.f32.gmra.mxu0 %v587
  %v897 = vpop.f32.mrf.mxu0
  %v898 = vadd.f32 %v516, %v897
  %v899 = vpop.f32.mrf.mxu0
  %v900 = vadd.f32 %v518, %v899
  %901 = vmatprep.mubr.f32.mxu0 0.0
  %902 = vmatmul.mubr.f32.gmra.mxu0 %v590
  %v903 = vpop.f32.mrf.mxu0
  %v904 = vadd.f32 %v522, %v903
  %v905 = vpop.f32.mrf.mxu0
  %v906 = vadd.f32 %v524, %v905
  %907 = vmatprep.mubr.f32.mxu0 0.0
  %908 = vmatmul.mubr.f32.gmra.mxu0 %v593
  %v909 = vpop.f32.mrf.mxu0
  %v910 = vadd.f32 %v528, %v909
  %v911 = vpop.f32.mrf.mxu0
  %v912 = vadd.f32 %v530, %v911
  %913 = vmatprep.mubr.f32.mxu0 0.0
  %914 = vmatmul.mubr.f32.gmra.mxu0 %v596
  %v915 = vpop.f32.mrf.mxu0
  %v916 = vadd.f32 %v534, %v915
  %v917 = vpop.f32.mrf.mxu0
  %v918 = vadd.f32 %v536, %v917
  %919 = vmatprep.mubr.f32.mxu0 0.0
  %920 = vmatmul.mubr.f32.gmra.mxu0 %v599
  %v921 = vpop.f32.mrf.mxu0
  %v922 = vadd.f32 %v540, %v921
  %v923 = vpop.f32.mrf.mxu0
  %v924 = vadd.f32 %v542, %v923
  %925 = vmatprep.mubr.f32.mxu0 0.0
  %926 = vmatmul.mubr.f32.gmra.mxu0 %v602
  %v927 = vpop.f32.mrf.mxu0
  %v928 = vadd.f32 %v546, %v927
  %v929 = vpop.f32.mrf.mxu0
  %v930 = vadd.f32 %v548, %v929
  %931 = vmatprep.mubr.f32.mxu0 0.0
  %932 = vmatmul.mubr.f32.gmra.mxu0 %v605
  %v933 = vpop.f32.mrf.mxu0
  %v934 = vadd.f32 %v552, %v933
  %v935 = vpop.f32.mrf.mxu0
  %v936 = vadd.f32 %v554, %v935
  %937 = vmatprep.mubr.f32.mxu0 0.0
  %938 = vmatmul.mubr.f32.gmra.mxu0 %v608
  %v939 = vpop.f32.mrf.mxu0
  %v940 = vadd.f32 %v558, %v939
  %v941 = vpop.f32.mrf.mxu0
  %v942 = vadd.f32 %v560, %v941
  %943 = vdwg.mxu0
  %v944 = vld [vmem:[%s6] sm:$0xff]
  %v945 = vld [vmem:[%s6 + $0x8] sm:$0xff]
  %v946 = vld [vmem:[%s6 + $0x10] sm:$0xff]
  %v947 = vld [vmem:[%s6 + $0x18] sm:$0xff]
  %v948 = vld [vmem:[%s6 + $0x20] sm:$0xff]
  %v949 = vld [vmem:[%s6 + $0x28] sm:$0xff]
  %v950 = vld [vmem:[%s6 + $0x30] sm:$0xff]
  %v951 = vld [vmem:[%s6 + $0x38] sm:$0xff]
  %v952 = vld [vmem:[%s6 + $0x40] sm:$0xff]
  %v953 = vld [vmem:[%s6 + $0x48] sm:$0xff]
  %v954 = vld [vmem:[%s6 + $0x50] sm:$0xff]
  %v955 = vld [vmem:[%s6 + $0x58] sm:$0xff]
  %v956 = vld [vmem:[%s6 + $0x60] sm:$0xff]
  %v957 = vld [vmem:[%s6 + $0x68] sm:$0xff]
  %v958 = vld [vmem:[%s6 + $0x70] sm:$0xff]
  %v959 = vld [vmem:[%s6 + $0x78] sm:$0xff]
  %v960 = vld [vmem:[%s6 + $0x80] sm:$0xff]
  %v961 = vld [vmem:[%s6 + $0x88] sm:$0xff]
  %v962 = vld [vmem:[%s6 + $0x90] sm:$0xff]
  %v963 = vld [vmem:[%s6 + $0x98] sm:$0xff]
  %v964 = vld [vmem:[%s6 + $0xa0] sm:$0xff]
  %v965 = vld [vmem:[%s6 + $0xa8] sm:$0xff]
  %v966 = vld [vmem:[%s6 + $0xb0] sm:$0xff]
  %v967 = vld [vmem:[%s6 + $0xb8] sm:$0xff]
  %v968 = vld [vmem:[%s6 + $0xc0] sm:$0xff]
  %v969 = vld [vmem:[%s6 + $0xc8] sm:$0xff]
  %v970 = vld [vmem:[%s6 + $0xd0] sm:$0xff]
  %v971 = vld [vmem:[%s6 + $0xd8] sm:$0xff]
  %v972 = vld [vmem:[%s6 + $0xe0] sm:$0xff]
  %v973 = vld [vmem:[%s6 + $0xe8] sm:$0xff]
  %v974 = vld [vmem:[%s6 + $0xf0] sm:$0xff]
  %v975 = vld [vmem:[%s6 + $0xf8] sm:$0xff]
  %v976 = vld [vmem:[%s6 + $0x100] sm:$0xff]
  %v977 = vld [vmem:[%s6 + $0x108] sm:$0xff]
  %v978 = vld [vmem:[%s6 + $0x110] sm:$0xff]
  %v979 = vld [vmem:[%s6 + $0x118] sm:$0xff]
  %v980 = vld [vmem:[%s6 + $0x120] sm:$0xff]
  %v981 = vld [vmem:[%s6 + $0x128] sm:$0xff]
  %v982 = vld [vmem:[%s6 + $0x130] sm:$0xff]
  %v983 = vld [vmem:[%s6 + $0x138] sm:$0xff]
  %v984 = vld [vmem:[%s6 + $0x140] sm:$0xff]
  %v985 = vld [vmem:[%s6 + $0x148] sm:$0xff]
  %v986 = vld [vmem:[%s6 + $0x150] sm:$0xff]
  %v987 = vld [vmem:[%s6 + $0x158] sm:$0xff]
  %v988 = vld [vmem:[%s6 + $0x160] sm:$0xff]
  %v989 = vld [vmem:[%s6 + $0x168] sm:$0xff]
  %v990 = vld [vmem:[%s6 + $0x170] sm:$0xff]
  %v991 = vld [vmem:[%s6 + $0x178] sm:$0xff]
  %v992 = vld [vmem:[%s6 + $0x180] sm:$0xff]
  %v993 = vld [vmem:[%s6 + $0x188] sm:$0xff]
  %v994 = vld [vmem:[%s6 + $0x190] sm:$0xff]
  %v995 = vld [vmem:[%s6 + $0x198] sm:$0xff]
  %v996 = vld [vmem:[%s6 + $0x1a0] sm:$0xff]
  %v997 = vld [vmem:[%s6 + $0x1a8] sm:$0xff]
  %v998 = vld [vmem:[%s6 + $0x1b0] sm:$0xff]
  %v999 = vld [vmem:[%s6 + $0x1b8] sm:$0xff]
  %v1000 = vld [vmem:[%s6 + $0x1c0] sm:$0xff]
  %v1001 = vld [vmem:[%s6 + $0x1c8] sm:$0xff]
  %v1002 = vld [vmem:[%s6 + $0x1d0] sm:$0xff]
  %v1003 = vld [vmem:[%s6 + $0x1d8] sm:$0xff]
  %v1004 = vld [vmem:[%s6 + $0x1e0] sm:$0xff]
  %v1005 = vld [vmem:[%s6 + $0x1e8] sm:$0xff]
  %v1006 = vld [vmem:[%s6 + $0x1f0] sm:$0xff]
  %v1007 = vld [vmem:[%s6 + $0x1f8] sm:$0xff]
  %v1008 = vadd.f32 %v689, %v944
  %v1009 = vadd.f32 %v691, %v945
  %v1010 = vadd.f32 %v850, %v946
  %v1011 = vadd.f32 %v852, %v947
  %v1012 = vadd.f32 %v695, %v948
  %v1013 = vadd.f32 %v697, %v949
  %v1014 = vadd.f32 %v856, %v950
  %v1015 = vadd.f32 %v858, %v951
  %v1016 = vadd.f32 %v701, %v952
  %v1017 = vadd.f32 %v703, %v953
  %v1018 = vadd.f32 %v862, %v954
  %v1019 = vadd.f32 %v864, %v955
  %v1020 = vadd.f32 %v707, %v956
  %v1021 = vadd.f32 %v709, %v957
  %v1022 = vadd.f32 %v868, %v958
  %v1023 = vadd.f32 %v870, %v959
  %v1024 = vadd.f32 %v713, %v960
  %v1025 = vadd.f32 %v715, %v961
  %v1026 = vadd.f32 %v874, %v962
  %v1027 = vadd.f32 %v876, %v963
  %v1028 = vadd.f32 %v719, %v964
  %v1029 = vadd.f32 %v721, %v965
  %v1030 = vadd.f32 %v880, %v966
  %v1031 = vadd.f32 %v882, %v967
  %v1032 = vadd.f32 %v725, %v968
  %v1033 = vadd.f32 %v727, %v969
  %v1034 = vadd.f32 %v886, %v970
  %v1035 = vadd.f32 %v888, %v971
  %v1036 = vadd.f32 %v731, %v972
  %v1037 = vadd.f32 %v733, %v973
  %v1038 = vadd.f32 %v892, %v974
  %v1039 = vadd.f32 %v894, %v975
  %v1040 = vadd.f32 %v737, %v976
  %v1041 = vadd.f32 %v739, %v977
  %v1042 = vadd.f32 %v898, %v978
  %v1043 = vadd.f32 %v900, %v979
  %v1044 = vadd.f32 %v743, %v980
  %v1045 = vadd.f32 %v745, %v981
  %v1046 = vadd.f32 %v904, %v982
  %v1047 = vadd.f32 %v906, %v983
  %v1048 = vadd.f32 %v749, %v984
  %v1049 = vadd.f32 %v751, %v985
  %v1050 = vadd.f32 %v910, %v986
  %v1051 = vadd.f32 %v912, %v987
  %v1052 = vadd.f32 %v755, %v988
  %v1053 = vadd.f32 %v757, %v989
  %v1054 = vadd.f32 %v916, %v990
  %v1055 = vadd.f32 %v918, %v991
  %v1056 = vadd.f32 %v761, %v992
  %v1057 = vadd.f32 %v763, %v993
  %v1058 = vadd.f32 %v922, %v994
  %v1059 = vadd.f32 %v924, %v995
  %v1060 = vadd.f32 %v767, %v996
  %v1061 = vadd.f32 %v769, %v997
  %v1062 = vadd.f32 %v928, %v998
  %v1063 = vadd.f32 %v930, %v999
  %v1064 = vadd.f32 %v773, %v1000
  %v1065 = vadd.f32 %v775, %v1001
  %v1066 = vadd.f32 %v934, %v1002
  %v1067 = vadd.f32 %v936, %v1003
  %v1068 = vadd.f32 %v779, %v1004
  %v1069 = vadd.f32 %v781, %v1005
  %v1070 = vadd.f32 %v940, %v1006
  %v1071 = vadd.f32 %v942, %v1007
  %v1072 = vxor.u32 %v1008, 2147483648
  %v1073 = vxor.u32 %v1009, 2147483648
  %v1074 = vxor.u32 %v1010, 2147483648
  %v1075 = vxor.u32 %v1011, 2147483648
  %v1076 = vxor.u32 %v1012, 2147483648
  %v1077 = vxor.u32 %v1013, 2147483648
  %v1078 = vxor.u32 %v1014, 2147483648
  %v1079 = vxor.u32 %v1015, 2147483648
  %v1080 = vxor.u32 %v1016, 2147483648
  %v1081 = vxor.u32 %v1017, 2147483648
  %v1082 = vxor.u32 %v1018, 2147483648
  %v1083 = vxor.u32 %v1019, 2147483648
  %v1084 = vxor.u32 %v1020, 2147483648
  %v1085 = vxor.u32 %v1021, 2147483648
  %v1086 = vxor.u32 %v1022, 2147483648
  %v1087 = vxor.u32 %v1023, 2147483648
  %v1088 = vxor.u32 %v1024, 2147483648
  %v1089 = vxor.u32 %v1025, 2147483648
  %v1090 = vxor.u32 %v1026, 2147483648
  %v1091 = vxor.u32 %v1027, 2147483648
  %v1092 = vxor.u32 %v1028, 2147483648
  %v1093 = vxor.u32 %v1029, 2147483648
  %v1094 = vxor.u32 %v1030, 2147483648
  %v1095 = vxor.u32 %v1031, 2147483648
  %v1096 = vxor.u32 %v1032, 2147483648
  %v1097 = vxor.u32 %v1033, 2147483648
  %v1098 = vxor.u32 %v1034, 2147483648
  %v1099 = vxor.u32 %v1035, 2147483648
  %v1100 = vxor.u32 %v1036, 2147483648
  %v1101 = vxor.u32 %v1037, 2147483648
  %v1102 = vxor.u32 %v1038, 2147483648
  %v1103 = vxor.u32 %v1039, 2147483648
  %v1104 = vxor.u32 %v1040, 2147483648
  %v1105 = vxor.u32 %v1041, 2147483648
  %v1106 = vxor.u32 %v1042, 2147483648
  %v1107 = vxor.u32 %v1043, 2147483648
  %v1108 = vxor.u32 %v1044, 2147483648
  %v1109 = vxor.u32 %v1045, 2147483648
  %v1110 = vxor.u32 %v1046, 2147483648
  %v1111 = vxor.u32 %v1047, 2147483648
  %v1112 = vxor.u32 %v1048, 2147483648
  %v1113 = vxor.u32 %v1049, 2147483648
  %v1114 = vxor.u32 %v1050, 2147483648
  %v1115 = vxor.u32 %v1051, 2147483648
  %v1116 = vxor.u32 %v1052, 2147483648
  %v1117 = vxor.u32 %v1053, 2147483648
  %v1118 = vxor.u32 %v1054, 2147483648
  %v1119 = vxor.u32 %v1055, 2147483648
  %v1120 = vxor.u32 %v1056, 2147483648
  %v1121 = vxor.u32 %v1057, 2147483648
  %v1122 = vxor.u32 %v1058, 2147483648
  %v1123 = vxor.u32 %v1059, 2147483648
  %v1124 = vxor.u32 %v1060, 2147483648
  %v1125 = vxor.u32 %v1061, 2147483648
  %v1126 = vxor.u32 %v1062, 2147483648
  %v1127 = vxor.u32 %v1063, 2147483648
  %v1128 = vxor.u32 %v1064, 2147483648
  %v1129 = vxor.u32 %v1065, 2147483648
  %v1130 = vxor.u32 %v1066, 2147483648
  %v1131 = vxor.u32 %v1067, 2147483648
  %v1132 = vxor.u32 %v1068, 2147483648
  %v1133 = vxor.u32 %v1069, 2147483648
  %v1134 = vxor.u32 %v1070, 2147483648
  %v1135 = vxor.u32 %v1071, 2147483648
  %v1136 = vmul.f32 %v1072, 1.442695
  %v1137 = vpow.pop %v1136
  %v1138 = vmul.f32 %v1073, 1.442695
  %v1139 = vpow.pop %v1138
  %v1140 = vmul.f32 %v1074, 1.442695
  %v1141 = vpow.pop %v1140
  %v1142 = vmul.f32 %v1075, 1.442695
  %v1143 = vpow.pop %v1142
  %v1144 = vmul.f32 %v1076, 1.442695
  %v1145 = vpow.pop %v1144
  %v1146 = vmul.f32 %v1077, 1.442695
  %v1147 = vpow.pop %v1146
  %v1148 = vmul.f32 %v1078, 1.442695
  %v1149 = vpow.pop %v1148
  %v1150 = vmul.f32 %v1079, 1.442695
  %v1151 = vpow.pop %v1150
  %v1152 = vmul.f32 %v1080, 1.442695
  %v1153 = vpow.pop %v1152
  %v1154 = vmul.f32 %v1081, 1.442695
  %v1155 = vpow.pop %v1154
  %v1156 = vmul.f32 %v1082, 1.442695
  %v1157 = vpow.pop %v1156
  %v1158 = vmul.f32 %v1083, 1.442695
  %v1159 = vpow.pop %v1158
  %v1160 = vmul.f32 %v1084, 1.442695
  %v1161 = vpow.pop %v1160
  %v1162 = vmul.f32 %v1085, 1.442695
  %v1163 = vpow.pop %v1162
  %v1164 = vmul.f32 %v1086, 1.442695
  %v1165 = vpow.pop %v1164
  %v1166 = vmul.f32 %v1087, 1.442695
  %v1167 = vpow.pop %v1166
  %v1168 = vmul.f32 %v1088, 1.442695
  %v1169 = vpow.pop %v1168
  %v1170 = vmul.f32 %v1089, 1.442695
  %v1171 = vpow.pop %v1170
  %v1172 = vmul.f32 %v1090, 1.442695
  %v1173 = vpow.pop %v1172
  %v1174 = vmul.f32 %v1091, 1.442695
  %v1175 = vpow.pop %v1174
  %v1176 = vmul.f32 %v1092, 1.442695
  %v1177 = vpow.pop %v1176
  %v1178 = vmul.f32 %v1093, 1.442695
  %v1179 = vpow.pop %v1178
  %v1180 = vmul.f32 %v1094, 1.442695
  %v1181 = vpow.pop %v1180
  %v1182 = vmul.f32 %v1095, 1.442695
  %v1183 = vpow.pop %v1182
  %v1184 = vmul.f32 %v1096, 1.442695
  %v1185 = vpow.pop %v1184
  %v1186 = vmul.f32 %v1097, 1.442695
  %v1187 = vpow.pop %v1186
  %v1188 = vmul.f32 %v1098, 1.442695
  %v1189 = vpow.pop %v1188
  %v1190 = vmul.f32 %v1099, 1.442695
  %v1191 = vpow.pop %v1190
  %v1192 = vmul.f32 %v1100, 1.442695
  %v1193 = vpow.pop %v1192
  %v1194 = vmul.f32 %v1101, 1.442695
  %v1195 = vpow.pop %v1194
  %v1196 = vmul.f32 %v1102, 1.442695
  %v1197 = vpow.pop %v1196
  %v1198 = vmul.f32 %v1103, 1.442695
  %v1199 = vpow.pop %v1198
  %v1200 = vmul.f32 %v1104, 1.442695
  %v1201 = vpow.pop %v1200
  %v1202 = vmul.f32 %v1105, 1.442695
  %v1203 = vpow.pop %v1202
  %v1204 = vmul.f32 %v1106, 1.442695
  %v1205 = vpow.pop %v1204
  %v1206 = vmul.f32 %v1107, 1.442695
  %v1207 = vpow.pop %v1206
  %v1208 = vmul.f32 %v1108, 1.442695
  %v1209 = vpow.pop %v1208
  %v1210 = vmul.f32 %v1109, 1.442695
  %v1211 = vpow.pop %v1210
  %v1212 = vmul.f32 %v1110, 1.442695
  %v1213 = vpow.pop %v1212
  %v1214 = vmul.f32 %v1111, 1.442695
  %v1215 = vpow.pop %v1214
  %v1216 = vmul.f32 %v1112, 1.442695
  %v1217 = vpow.pop %v1216
  %v1218 = vmul.f32 %v1113, 1.442695
  %v1219 = vpow.pop %v1218
  %v1220 = vmul.f32 %v1114, 1.442695
  %v1221 = vpow.pop %v1220
  %v1222 = vmul.f32 %v1115, 1.442695
  %v1223 = vpow.pop %v1222
  %v1224 = vmul.f32 %v1116, 1.442695
  %v1225 = vpow.pop %v1224
  %v1226 = vmul.f32 %v1117, 1.442695
  %v1227 = vpow.pop %v1226
  %v1228 = vmul.f32 %v1118, 1.442695
  %v1229 = vpow.pop %v1228
  %v1230 = vmul.f32 %v1119, 1.442695
  %v1231 = vpow.pop %v1230
  %v1232 = vmul.f32 %v1120, 1.442695
  %v1233 = vpow.pop %v1232
  %v1234 = vmul.f32 %v1121, 1.442695
  %v1235 = vpow.pop %v1234
  %v1236 = vmul.f32 %v1122, 1.442695
  %v1237 = vpow.pop %v1236
  %v1238 = vmul.f32 %v1123, 1.442695
  %v1239 = vpow.pop %v1238
  %v1240 = vmul.f32 %v1124, 1.442695
  %v1241 = vpow.pop %v1240
  %v1242 = vmul.f32 %v1125, 1.442695
  %v1243 = vpow.pop %v1242
  %v1244 = vmul.f32 %v1126, 1.442695
  %v1245 = vpow.pop %v1244
  %v1246 = vmul.f32 %v1127, 1.442695
  %v1247 = vpow.pop %v1246
  %v1248 = vmul.f32 %v1128, 1.442695
  %v1249 = vpow.pop %v1248
  %v1250 = vmul.f32 %v1129, 1.442695
  %v1251 = vpow.pop %v1250
  %v1252 = vmul.f32 %v1130, 1.442695
  %v1253 = vpow.pop %v1252
  %v1254 = vmul.f32 %v1131, 1.442695
  %v1255 = vpow.pop %v1254
  %v1256 = vmul.f32 %v1132, 1.442695
  %v1257 = vpow.pop %v1256
  %v1258 = vmul.f32 %v1133, 1.442695
  %v1259 = vpow.pop %v1258
  %v1260 = vmul.f32 %v1134, 1.442695
  %v1261 = vpow.pop %v1260
  %v1262 = vmul.f32 %v1135, 1.442695
  %v1263 = vpow.pop %v1262
  %v1264 = vadd.f32 %v1137, 1.0
  %v1265 = vadd.f32 %v1139, 1.0
  %v1266 = vadd.f32 %v1141, 1.0
  %v1267 = vadd.f32 %v1143, 1.0
  %v1268 = vadd.f32 %v1145, 1.0
  %v1269 = vadd.f32 %v1147, 1.0
  %v1270 = vadd.f32 %v1149, 1.0
  %v1271 = vadd.f32 %v1151, 1.0
  %v1272 = vadd.f32 %v1153, 1.0
  %v1273 = vadd.f32 %v1155, 1.0
  %v1274 = vadd.f32 %v1157, 1.0
  %v1275 = vadd.f32 %v1159, 1.0
  %v1276 = vadd.f32 %v1161, 1.0
  %v1277 = vadd.f32 %v1163, 1.0
  %v1278 = vadd.f32 %v1165, 1.0
  %v1279 = vadd.f32 %v1167, 1.0
  %v1280 = vadd.f32 %v1169, 1.0
  %v1281 = vadd.f32 %v1171, 1.0
  %v1282 = vadd.f32 %v1173, 1.0
  %v1283 = vadd.f32 %v1175, 1.0
  %v1284 = vadd.f32 %v1177, 1.0
  %v1285 = vadd.f32 %v1179, 1.0
  %v1286 = vadd.f32 %v1181, 1.0
  %v1287 = vadd.f32 %v1183, 1.0
  %v1288 = vadd.f32 %v1185, 1.0
  %v1289 = vadd.f32 %v1187, 1.0
  %v1290 = vadd.f32 %v1189, 1.0
  %v1291 = vadd.f32 %v1191, 1.0
  %v1292 = vadd.f32 %v1193, 1.0
  %v1293 = vadd.f32 %v1195, 1.0
  %v1294 = vadd.f32 %v1197, 1.0
  %v1295 = vadd.f32 %v1199, 1.0
  %v1296 = vadd.f32 %v1201, 1.0
  %v1297 = vadd.f32 %v1203, 1.0
  %v1298 = vadd.f32 %v1205, 1.0
  %v1299 = vadd.f32 %v1207, 1.0
  %v1300 = vadd.f32 %v1209, 1.0
  %v1301 = vadd.f32 %v1211, 1.0
  %v1302 = vadd.f32 %v1213, 1.0
  %v1303 = vadd.f32 %v1215, 1.0
  %v1304 = vadd.f32 %v1217, 1.0
  %v1305 = vadd.f32 %v1219, 1.0
  %v1306 = vadd.f32 %v1221, 1.0
  %v1307 = vadd.f32 %v1223, 1.0
  %v1308 = vadd.f32 %v1225, 1.0
  %v1309 = vadd.f32 %v1227, 1.0
  %v1310 = vadd.f32 %v1229, 1.0
  %v1311 = vadd.f32 %v1231, 1.0
  %v1312 = vadd.f32 %v1233, 1.0
  %v1313 = vadd.f32 %v1235, 1.0
  %v1314 = vadd.f32 %v1237, 1.0
  %v1315 = vadd.f32 %v1239, 1.0
  %v1316 = vadd.f32 %v1241, 1.0
  %v1317 = vadd.f32 %v1243, 1.0
  %v1318 = vadd.f32 %v1245, 1.0
  %v1319 = vadd.f32 %v1247, 1.0
  %v1320 = vadd.f32 %v1249, 1.0
  %v1321 = vadd.f32 %v1251, 1.0
  %v1322 = vadd.f32 %v1253, 1.0
  %v1323 = vadd.f32 %v1255, 1.0
  %v1324 = vadd.f32 %v1257, 1.0
  %v1325 = vadd.f32 %v1259, 1.0
  %v1326 = vadd.f32 %v1261, 1.0
  %v1327 = vadd.f32 %v1263, 1.0
  %v1328 = vrcp.pop %v1264
  %v1329 = vmul.f32 1.0, %v1328
  %v1330 = vrcp.pop %v1265
  %v1331 = vmul.f32 1.0, %v1330
  %v1332 = vrcp.pop %v1266
  %v1333 = vmul.f32 1.0, %v1332
  %v1334 = vrcp.pop %v1267
  %v1335 = vmul.f32 1.0, %v1334
  %v1336 = vrcp.pop %v1268
  %v1337 = vmul.f32 1.0, %v1336
  %v1338 = vrcp.pop %v1269
  %v1339 = vmul.f32 1.0, %v1338
  %v1340 = vrcp.pop %v1270
  %v1341 = vmul.f32 1.0, %v1340
  %v1342 = vrcp.pop %v1271
  %v1343 = vmul.f32 1.0, %v1342
  %v1344 = vrcp.pop %v1272
  %v1345 = vmul.f32 1.0, %v1344
  %v1346 = vrcp.pop %v1273
  %v1347 = vmul.f32 1.0, %v1346
  %v1348 = vrcp.pop %v1274
  %v1349 = vmul.f32 1.0, %v1348
  %v1350 = vrcp.pop %v1275
  %v1351 = vmul.f32 1.0, %v1350
  %v1352 = vrcp.pop %v1276
  %v1353 = vmul.f32 1.0, %v1352
  %v1354 = vrcp.pop %v1277
  %v1355 = vmul.f32 1.0, %v1354
  %v1356 = vrcp.pop %v1278
  %v1357 = vmul.f32 1.0, %v1356
  %v1358 = vrcp.pop %v1279
  %v1359 = vmul.f32 1.0, %v1358
  %v1360 = vrcp.pop %v1280
  %v1361 = vmul.f32 1.0, %v1360
  %v1362 = vrcp.pop %v1281
  %v1363 = vmul.f32 1.0, %v1362
  %v1364 = vrcp.pop %v1282
  %v1365 = vmul.f32 1.0, %v1364
  %v1366 = vrcp.pop %v1283
  %v1367 = vmul.f32 1.0, %v1366
  %v1368 = vrcp.pop %v1284
  %v1369 = vmul.f32 1.0, %v1368
  %v1370 = vrcp.pop %v1285
  %v1371 = vmul.f32 1.0, %v1370
  %v1372 = vrcp.pop %v1286
  %v1373 = vmul.f32 1.0, %v1372
  %v1374 = vrcp.pop %v1287
  %v1375 = vmul.f32 1.0, %v1374
  %v1376 = vrcp.pop %v1288
  %v1377 = vmul.f32 1.0, %v1376
  %v1378 = vrcp.pop %v1289
  %v1379 = vmul.f32 1.0, %v1378
  %v1380 = vrcp.pop %v1290
  %v1381 = vmul.f32 1.0, %v1380
  %v1382 = vrcp.pop %v1291
  %v1383 = vmul.f32 1.0, %v1382
  %v1384 = vrcp.pop %v1292
  %v1385 = vmul.f32 1.0, %v1384
  %v1386 = vrcp.pop %v1293
  %v1387 = vmul.f32 1.0, %v1386
  %v1388 = vrcp.pop %v1294
  %v1389 = vmul.f32 1.0, %v1388
  %v1390 = vrcp.pop %v1295
  %v1391 = vmul.f32 1.0, %v1390
  %v1392 = vrcp.pop %v1296
  %v1393 = vmul.f32 1.0, %v1392
  %v1394 = vrcp.pop %v1297
  %v1395 = vmul.f32 1.0, %v1394
  %v1396 = vrcp.pop %v1298
  %v1397 = vmul.f32 1.0, %v1396
  %v1398 = vrcp.pop %v1299
  %v1399 = vmul.f32 1.0, %v1398
  %v1400 = vrcp.pop %v1300
  %v1401 = vmul.f32 1.0, %v1400
  %v1402 = vrcp.pop %v1301
  %v1403 = vmul.f32 1.0, %v1402
  %v1404 = vrcp.pop %v1302
  %v1405 = vmul.f32 1.0, %v1404
  %v1406 = vrcp.pop %v1303
  %v1407 = vmul.f32 1.0, %v1406
  %v1408 = vrcp.pop %v1304
  %v1409 = vmul.f32 1.0, %v1408
  %v1410 = vrcp.pop %v1305
  %v1411 = vmul.f32 1.0, %v1410
  %v1412 = vrcp.pop %v1306
  %v1413 = vmul.f32 1.0, %v1412
  %v1414 = vrcp.pop %v1307
  %v1415 = vmul.f32 1.0, %v1414
  %v1416 = vrcp.pop %v1308
  %v1417 = vmul.f32 1.0, %v1416
  %v1418 = vrcp.pop %v1309
  %v1419 = vmul.f32 1.0, %v1418
  %v1420 = vrcp.pop %v1310
  %v1421 = vmul.f32 1.0, %v1420
  %v1422 = vrcp.pop %v1311
  %v1423 = vmul.f32 1.0, %v1422
  %v1424 = vrcp.pop %v1312
  %v1425 = vmul.f32 1.0, %v1424
  %v1426 = vrcp.pop %v1313
  %v1427 = vmul.f32 1.0, %v1426
  %v1428 = vrcp.pop %v1314
  %v1429 = vmul.f32 1.0, %v1428
  %v1430 = vrcp.pop %v1315
  %v1431 = vmul.f32 1.0, %v1430
  %v1432 = vrcp.pop %v1316
  %v1433 = vmul.f32 1.0, %v1432
  %v1434 = vrcp.pop %v1317
  %v1435 = vmul.f32 1.0, %v1434
  %v1436 = vrcp.pop %v1318
  %v1437 = vmul.f32 1.0, %v1436
  %v1438 = vrcp.pop %v1319
  %v1439 = vmul.f32 1.0, %v1438
  %v1440 = vrcp.pop %v1320
  %v1441 = vmul.f32 1.0, %v1440
  %v1442 = vrcp.pop %v1321
  %v1443 = vmul.f32 1.0, %v1442
  %v1444 = vrcp.pop %v1322
  %v1445 = vmul.f32 1.0, %v1444
  %v1446 = vrcp.pop %v1323
  %v1447 = vmul.f32 1.0, %v1446
  %v1448 = vrcp.pop %v1324
  %v1449 = vmul.f32 1.0, %v1448
  %v1450 = vrcp.pop %v1325
  %v1451 = vmul.f32 1.0, %v1450
  %v1452 = vrcp.pop %v1326
  %v1453 = vmul.f32 1.0, %v1452
  %v1454 = vrcp.pop %v1327
  %v1455 = vmul.f32 1.0, %v1454
  %v1456 = vmul.f32 %v1008, %v1329
  %v1457 = vmul.f32 %v1009, %v1331
  %v1458 = vmul.f32 %v1010, %v1333
  %v1459 = vmul.f32 %v1011, %v1335
  %v1460 = vmul.f32 %v1012, %v1337
  %v1461 = vmul.f32 %v1013, %v1339
  %v1462 = vmul.f32 %v1014, %v1341
  %v1463 = vmul.f32 %v1015, %v1343
  %v1464 = vmul.f32 %v1016, %v1345
  %v1465 = vmul.f32 %v1017, %v1347
  %v1466 = vmul.f32 %v1018, %v1349
  %v1467 = vmul.f32 %v1019, %v1351
  %v1468 = vmul.f32 %v1020, %v1353
  %v1469 = vmul.f32 %v1021, %v1355
  %v1470 = vmul.f32 %v1022, %v1357
  %v1471 = vmul.f32 %v1023, %v1359
  %v1472 = vmul.f32 %v1024, %v1361
  %v1473 = vmul.f32 %v1025, %v1363
  %v1474 = vmul.f32 %v1026, %v1365
  %v1475 = vmul.f32 %v1027, %v1367
  %v1476 = vmul.f32 %v1028, %v1369
  %v1477 = vmul.f32 %v1029, %v1371
  %v1478 = vmul.f32 %v1030, %v1373
  %v1479 = vmul.f32 %v1031, %v1375
  %v1480 = vmul.f32 %v1032, %v1377
  %v1481 = vmul.f32 %v1033, %v1379
  %v1482 = vmul.f32 %v1034, %v1381
  %v1483 = vmul.f32 %v1035, %v1383
  %v1484 = vmul.f32 %v1036, %v1385
  %v1485 = vmul.f32 %v1037, %v1387
  %v1486 = vmul.f32 %v1038, %v1389
  %v1487 = vmul.f32 %v1039, %v1391
  %v1488 = vmul.f32 %v1040, %v1393
  %v1489 = vmul.f32 %v1041, %v1395
  %v1490 = vmul.f32 %v1042, %v1397
  %v1491 = vmul.f32 %v1043, %v1399
  %v1492 = vmul.f32 %v1044, %v1401
  %v1493 = vmul.f32 %v1045, %v1403
  %v1494 = vmul.f32 %v1046, %v1405
  %v1495 = vmul.f32 %v1047, %v1407
  %v1496 = vmul.f32 %v1048, %v1409
  %v1497 = vmul.f32 %v1049, %v1411
  %v1498 = vmul.f32 %v1050, %v1413
  %v1499 = vmul.f32 %v1051, %v1415
  %v1500 = vmul.f32 %v1052, %v1417
  %v1501 = vmul.f32 %v1053, %v1419
  %v1502 = vmul.f32 %v1054, %v1421
  %v1503 = vmul.f32 %v1055, %v1423
  %v1504 = vmul.f32 %v1056, %v1425
  %v1505 = vmul.f32 %v1057, %v1427
  %v1506 = vmul.f32 %v1058, %v1429
  %v1507 = vmul.f32 %v1059, %v1431
  %v1508 = vmul.f32 %v1060, %v1433
  %v1509 = vmul.f32 %v1061, %v1435
  %v1510 = vmul.f32 %v1062, %v1437
  %v1511 = vmul.f32 %v1063, %v1439
  %v1512 = vmul.f32 %v1064, %v1441
  %v1513 = vmul.f32 %v1065, %v1443
  %v1514 = vmul.f32 %v1066, %v1445
  %v1515 = vmul.f32 %v1067, %v1447
  %v1516 = vmul.f32 %v1068, %v1449
  %v1517 = vmul.f32 %v1069, %v1451
  %v1518 = vmul.f32 %v1070, %v1453
  %v1519 = vmul.f32 %v1071, %v1455
  %v1520 = vld [vmem:[%s9] sm:$0xf]
  %v1521 = vld [vmem:[%s10] sm:$0xf]
  %1523 = vset.pattern.permute.xlu0 0
  %1524 = vperm.xlu0 %1523, %v1521
  %v1525 = vpop.permute.xlu0 %1524
  %1527 = vmatprep.subr.mxu0 %v1517
  %1528 = vmatpush1.msra.mxu0 %v1516
  %1529 = vmatprep.subr.mxu0 %v1513
  %1530 = vmatpush1.msra.mxu0 %v1512
  %1531 = vmatprep.subr.mxu0 %v1509
  %1532 = vmatpush1.msra.mxu0 %v1508
  %1533 = vmatprep.subr.mxu0 %v1505
  %1534 = vmatpush1.msra.mxu0 %v1504
  %1535 = vmatprep.subr.mxu0 %v1501
  %1536 = vmatpush1.msra.mxu0 %v1500
  %1537 = vmatprep.subr.mxu0 %v1497
  %1538 = vmatpush1.msra.mxu0 %v1496
  %1539 = vmatprep.subr.mxu0 %v1493
  %1540 = vmatpush1.msra.mxu0 %v1492
  %1541 = vmatprep.subr.mxu0 %v1489
  %1542 = vmatpush1.msra.mxu0 %v1488
  %1543 = vmatprep.subr.mxu0 %v1485
  %1544 = vmatpush1.msra.mxu0 %v1484
  %1545 = vmatprep.subr.mxu0 %v1481
  %1546 = vmatpush1.msra.mxu0 %v1480
  %1547 = vmatprep.subr.mxu0 %v1477
  %1548 = vmatpush1.msra.mxu0 %v1476
  %1549 = vmatprep.subr.mxu0 %v1473
  %1550 = vmatpush1.msra.mxu0 %v1472
  %1551 = vmatprep.subr.mxu0 %v1469
  %1552 = vmatpush1.msra.mxu0 %v1468
  %1553 = vmatprep.subr.mxu0 %v1465
  %1554 = vmatpush1.msra.mxu0 %v1464
  %1555 = vmatprep.subr.mxu0 %v1461
  %1556 = vmatpush1.msra.mxu0 %v1460
  %1557 = vmatprep.subr.mxu0 %v1457
  %1558 = vmatpush1.msra.mxu0 %v1456
  %1559 = vmatprep.subr.mxu0 0.0
  %1560 = vmatpush2.msra.mxu0 0.0
  %1561 = vmatprep.subr.mxu0 0.0
  %1562 = vmatpush2.msra.mxu0 0.0
  %1563 = vmatprep.subr.mxu0 0.0
  %1564 = vmatpush2.msra.mxu0 0.0
  %1565 = vmatprep.subr.mxu0 0.0
  %1566 = vmatpush2.msra.mxu0 0.0
  %1567 = vmatprep.subr.mxu0 0.0
  %1568 = vmatpush2.msra.mxu0 0.0
  %1569 = vmatprep.subr.mxu0 0.0
  %1570 = vmatpush2.msra.mxu0 0.0
  %1571 = vmatprep.subr.mxu0 0.0
  %1572 = vmatpush2.msra.mxu0 0.0
  %1573 = vmatprep.subr.mxu0 0.0
  %1574 = vmatpush2.msra.mxu0 0.0
  %1575 = vmatprep.subr.mxu0 0.0
  %1576 = vmatpush2.msra.mxu0 0.0
  %1577 = vmatprep.subr.mxu0 0.0
  %1578 = vmatpush2.msra.mxu0 0.0
  %1579 = vmatprep.subr.mxu0 0.0
  %1580 = vmatpush2.msra.mxu0 0.0
  %1581 = vmatprep.subr.mxu0 0.0
  %1582 = vmatpush2.msra.mxu0 0.0
  %1583 = vmatprep.subr.mxu0 0.0
  %1584 = vmatpush2.msra.mxu0 0.0
  %1585 = vmatprep.subr.mxu0 0.0
  %1586 = vmatpush2.msra.mxu0 0.0
  %1587 = vmatprep.subr.mxu0 0.0
  %1588 = vmatpush2.msra.mxu0 0.0
  %1589 = vmatprep.subr.mxu0 0.0
  %1590 = vmatpush2.msra.mxu0 0.0
  %1591 = vmatprep.mubr.f32.mxu0 0.0
  %1592 = vmatmul.mubr.f32.gmra.mxu0 %v1520
  %v1593 = vpop.f32.mrf.mxu0
  %v1594 = vadd.f32 %v1525, %v1593
  %v1595 = vpop.f32.mrf.mxu0
  %v1596 = vadd.f32 %v1525, %v1595
  %1597 = vdwg.mxu0
  %1598 = vmatprep.subr.mxu0 %v1519
  %1599 = vmatpush1.msra.mxu0 %v1518
  %1600 = vmatprep.subr.mxu0 %v1515
  %1601 = vmatpush1.msra.mxu0 %v1514
  %1602 = vmatprep.subr.mxu0 %v1511
  %1603 = vmatpush1.msra.mxu0 %v1510
  %1604 = vmatprep.subr.mxu0 %v1507
  %1605 = vmatpush1.msra.mxu0 %v1506
  %1606 = vmatprep.subr.mxu0 %v1503
  %1607 = vmatpush1.msra.mxu0 %v1502
  %1608 = vmatprep.subr.mxu0 %v1499
  %1609 = vmatpush1.msra.mxu0 %v1498
  %1610 = vmatprep.subr.mxu0 %v1495
  %1611 = vmatpush1.msra.mxu0 %v1494
  %1612 = vmatprep.subr.mxu0 %v1491
  %1613 = vmatpush1.msra.mxu0 %v1490
  %1614 = vmatprep.subr.mxu0 %v1487
  %1615 = vmatpush1.msra.mxu0 %v1486
  %1616 = vmatprep.subr.mxu0 %v1483
  %1617 = vmatpush1.msra.mxu0 %v1482
  %1618 = vmatprep.subr.mxu0 %v1479
  %1619 = vmatpush1.msra.mxu0 %v1478
  %1620 = vmatprep.subr.mxu0 %v1475
  %1621 = vmatpush1.msra.mxu0 %v1474
  %1622 = vmatprep.subr.mxu0 %v1471
  %1623 = vmatpush1.msra.mxu0 %v1470
  %1624 = vmatprep.subr.mxu0 %v1467
  %1625 = vmatpush1.msra.mxu0 %v1466
  %1626 = vmatprep.subr.mxu0 %v1463
  %1627 = vmatpush1.msra.mxu0 %v1462
  %1628 = vmatprep.subr.mxu0 %v1459
  %1629 = vmatpush1.msra.mxu0 %v1458
  %1630 = vmatprep.subr.mxu0 0.0
  %1631 = vmatpush2.msra.mxu0 0.0
  %1632 = vmatprep.subr.mxu0 0.0
  %1633 = vmatpush2.msra.mxu0 0.0
  %1634 = vmatprep.subr.mxu0 0.0
  %1635 = vmatpush2.msra.mxu0 0.0
  %1636 = vmatprep.subr.mxu0 0.0
  %1637 = vmatpush2.msra.mxu0 0.0
  %1638 = vmatprep.subr.mxu0 0.0
  %1639 = vmatpush2.msra.mxu0 0.0
  %1640 = vmatprep.subr.mxu0 0.0
  %1641 = vmatpush2.msra.mxu0 0.0
  %1642 = vmatprep.subr.mxu0 0.0
  %1643 = vmatpush2.msra.mxu0 0.0
  %1644 = vmatprep.subr.mxu0 0.0
  %1645 = vmatpush2.msra.mxu0 0.0
  %1646 = vmatprep.subr.mxu0 0.0
  %1647 = vmatpush2.msra.mxu0 0.0
  %1648 = vmatprep.subr.mxu0 0.0
  %1649 = vmatpush2.msra.mxu0 0.0
  %1650 = vmatprep.subr.mxu0 0.0
  %1651 = vmatpush2.msra.mxu0 0.0
  %1652 = vmatprep.subr.mxu0 0.0
  %1653 = vmatpush2.msra.mxu0 0.0
  %1654 = vmatprep.subr.mxu0 0.0
  %1655 = vmatpush2.msra.mxu0 0.0
  %1656 = vmatprep.subr.mxu0 0.0
  %1657 = vmatpush2.msra.mxu0 0.0
  %1658 = vmatprep.subr.mxu0 0.0
  %1659 = vmatpush2.msra.mxu0 0.0
  %1660 = vmatprep.subr.mxu0 0.0
  %1661 = vmatpush2.msra.mxu0 0.0
  %1662 = vmatprep.mubr.f32.mxu0 0.0
  %1663 = vmatmul.mubr.f32.gmra.mxu0 %v1520
  %v1664 = vpop.f32.mrf.mxu0
  %v1665 = vadd.f32 %v1525, %v1664
  %v1666 = vpop.f32.mrf.mxu0
  %v1667 = vadd.f32 %v1525, %v1666
  %1668 = vdwg.mxu0
  %v1673 = vcombine.low %v1594, %v1596
  %v1674 = vcombine.low %v1665, %v1667
  %v1677 = vsub.f32 %v46, %v1673
  %v1678 = vsub.f32 %v47, %v1674
  %v1679 = vand.u32 2147483647, %v1677
  %v1680 = vand.u32 2147483647, %v1678
  %v1683 = vcombine.high %v1679, %v1679
  %v1684 = vcombine.high %v1680, %v1680
  %v1687 = vsel %vm231, %v1679, 0.0
  %v1688 = vrot.slane %v1687, 4
  %v1689 = vadd.f32 %v1687, %v1688
  %v1690 = vrot.slane %v1689, 2
  %v1691 = vadd.f32 %v1689, %v1690
  %v1692 = vrot.slane %v1691, 1
  %v1693 = vadd.f32 %v1691, %v1692
  %v1694 = vsel %vm231, %v1683, 0.0
  %v1695 = vrot.slane %v1694, 4
  %v1696 = vadd.f32 %v1694, %v1695
  %v1697 = vrot.slane %v1696, 2
  %v1698 = vadd.f32 %v1696, %v1697
  %v1699 = vrot.slane %v1698, 1
  %v1700 = vadd.f32 %v1698, %v1699
  %v1701 = vsel %vm231, %v1680, 0.0
  %v1702 = vrot.slane %v1701, 4
  %v1703 = vadd.f32 %v1701, %v1702
  %v1704 = vrot.slane %v1703, 2
  %v1705 = vadd.f32 %v1703, %v1704
  %v1706 = vrot.slane %v1705, 1
  %v1707 = vadd.f32 %v1705, %v1706
  %v1708 = vsel %vm231, %v1684, 0.0
  %v1709 = vrot.slane %v1708, 4
  %v1710 = vadd.f32 %v1708, %v1709
  %v1711 = vrot.slane %v1710, 2
  %v1712 = vadd.f32 %v1710, %v1711
  %v1713 = vrot.slane %v1712, 1
  %v1714 = vadd.f32 %v1712, %v1713
  %v1719 = vcombine.low %v1693, %v1700
  %v1720 = vcombine.low %v1707, %v1714
  %v1722 = vunpack.c.l.s4 1966171168
  %v1723 = vunpack.c.0.s8 %v1722
  %v1724 = vlaneseq
  %v1725 = vshrl.u32 %v1724, 7
  %v1726 = vsub.s32 %v1723, %v1725
  %v1727 = vrot.slane %v1719, %v1726
  %v1729 = vunpack.c.l.s4 1966171168
  %v1730 = vunpack.c.0.s8 %v1729
  %v1731 = vlaneseq
  %v1732 = vshrl.u32 %v1731, 7
  %v1733 = vsub.s32 %v1730, %v1732
  %v1734 = vrot.slane %v1720, %v1733
  %v1735 = vcombine.low %v1727, %v1734
  %v1737 = vunpack.c.l.s4 1966171168
  %v1738 = vunpack.c.0.s8 %v1737
  %v1739 = vlaneseq
  %v1740 = vshrl.u32 %v1739, 7
  %v1741 = vsub.s32 %v1738, %v1740
  %v1742 = vrot.slane %v1735, %v1741
  %v1744 = vlaneseq
  %vm1745 = vcmp.ge.s32.totalorder %v1744, 0
  %vm1746 = vcmp.lt.s32.totalorder %v1744, 512
  %vm1747 = vmand %vm1745, %vm1746
  %1748 = vst.msk [vmem:[%s12] sm:$0xf] %vm1747, %v1742
  %v1749 = vsub.f32 %v146, %v107
  %v1750 = vsub.f32 %v147, %v108
  %v1751 = vsub.f32 %v148, %v109
  %v1752 = vsub.f32 %v149, %v110
  %v1753 = vmul.f32 %v119, %v1594
  %v1754 = vmul.f32 %v123, %v1596
  %v1755 = vmul.f32 %v127, %v1665
  %v1756 = vmul.f32 %v131, %v1667
  %v1757 = vsub.f32 %v1749, %v1753
  %v1758 = vsub.f32 %v1750, %v1754
  %v1759 = vsub.f32 %v1751, %v1755
  %v1760 = vsub.f32 %v1752, %v1756
  %v1761 = vld [vmem:[%s2] sm:$0xf]
  %v1763 = vlaneseq
  %v1764 = vshrl.u32 %v1763, 7
  %v1765 = vsub.s32 0, %v1764
  %v1766 = vrot.slane %v1761, %v1765
  %v1767 = vlaneseq
  %v1768 = vshrl.u32 %v1767, 7
  %v1769 = vsub.s32 1, %v1768
  %v1770 = vrot.slane %v1761, %v1769
  %v1771 = vlaneseq
  %v1772 = vshrl.u32 %v1771, 7
  %v1773 = vsub.s32 2, %v1772
  %v1774 = vrot.slane %v1761, %v1773
  %v1775 = vlaneseq
  %v1776 = vshrl.u32 %v1775, 7
  %v1777 = vsub.s32 3, %v1776
  %v1778 = vrot.slane %v1761, %v1777
  %v1783 = vmul.f32 %v1757, %v1766
  %v1784 = vmul.f32 %v1758, %v1770
  %v1785 = vmul.f32 %v1759, %v1774
  %v1786 = vmul.f32 %v1760, %v1778
  %v1791 = vcombine.low %v1783, %v1784
  %v1792 = vcombine.low %v1785, %v1786
  %1795 = vst [vmem:[%s11] sm:$0xff] %v1791
  %1796 = vst [vmem:[%s11 + $0x8] sm:$0xff] %v1792
  // Predicated region
  $region46: #{forward.21} parent=0 // pred_check
    _
  $region47: #{forward.21} parent=0 // pred_check_branch
    %1798 = sbr.rel (0) target = $region49
  $region48: #{forward.21} parent=0 // pred_region
    _
  $region49: #{forward.21} parent=0 // pred_fallthru
    _
  // Predicated region
  $region50: #{forward.21} parent=0 // pred_check
    _
  $region51: #{forward.21} parent=0 // pred_check_branch
    %1800 = sbr.rel (0) target = $region53
  $region52: #{forward.21} parent=0 // pred_region
    _
  $region53: #{forward.21} parent=0 // pred_fallthru
    _
  // Predicated region
  $region54: #{forward.21} parent=0 // pred_check
    _
  $region55: #{forward.21} parent=0 // pred_check_branch
    %1802 = sbr.rel (0) target = $region57
  $region56: #{forward.21} parent=0 // pred_region
    _
  $region57: #{forward.21} parent=0 // pred_fallthru
    _
  // Predicated region
  $region58: #{forward.21} parent=0 // pred_check
    _
  $region59: #{forward.21} parent=0 // pred_check_branch
    %1804 = sbr.rel (0) target = $region61
  $region60: #{forward.21} parent=0 // pred_region
    _
  $region61: #{forward.21} parent=0 // pred_fallthru
    _

</llo_original>
